<compile_context>
chip_gen: v7x
topology: tpu7x:2x2x1
jax: 0.10.0
libtpu: 0.0.40
codegen_flags: <defaults>
</compile_context>

<pallas_src>
import jax
import jax.numpy as jnp
from jax.experimental import pallas as pl
from jax.experimental.pallas import tpu as pltpu

# ---- DilConv configuration (small, consistent with the module) ----
N_BATCH = 2
C_IN = 4
C_OUT = 8
KH = KW = 3
STRIDE = 1          # kernel below assumes stride 1
PAD = 2
DIL = 2
H_IN = W_IN = 16
H_OUT = (H_IN + 2 * PAD - DIL * (KH - 1) - 1) // STRIDE + 1   # = 16
W_OUT = (W_IN + 2 * PAD - DIL * (KW - 1) - 1) // STRIDE + 1   # = 16
P_OUT = H_OUT * W_OUT            # 256  (lane-dense: multiple of 128)
NP_OUT = N_BATCH * P_OUT         # 512  (lane-dense: multiple of 128)
NTAPS = KH * KW                  # 9
ROWS = NTAPS * C_IN              # 36  im2col rows (tap-major)

WEIGHT_BITS = 5
SHIFT_MIN = -(2 ** (WEIGHT_BITS - 1) - 2)   # -14
FP_SCALE = 2.0 ** 16                        # act_fraction_bits = 16 (Q16.16)
INV_FP_SCALE = 2.0 ** -16                   # exact power of two: mul, not div
BN_EPS = 1e-5

# TODO(synk): ste.round_fixed_point's tie-breaking / saturation bounds are not
# in the provided source; quantization here is round-half-to-even Q16.16
# without saturation.
# TODO(synk): training-mode BatchNorm2d would also update running_mean/var;
# that side effect is intentionally not modeled (forward output is unaffected).


def dilconv_kernel(xcol_ref, wbd_ref, wpw_ref, o_ref):
    """Fused ReLU + quant + depthwise dilated conv + quant + 1x1 conv + BatchNorm.

    xcol_ref: VMEM (ROWS, N*H*W)   im2col slab, row = tap*C_IN + channel, zero-padded taps
    wbd_ref : VMEM (C_IN, ROWS)    block-diagonal depthwise power-of-two weights
    wpw_ref : VMEM (C_OUT, C_IN)   pointwise power-of-two weights
    o_ref   : VMEM (N, C_OUT, H*W) lane-dense output slab (256-wide unmasked stores)
    """
    # ---- stage 1: ReLU -> Q16.16 quant, single pass over the full (36,512) slab ----
    # (Zero padding commutes with ReLU / quantization: both map 0 -> 0, and
    #  quantizing replicated taps equals quantizing once then replicating.)
    xq = jnp.maximum(xcol_ref[...], 0.0)                      # nn.ReLU
    xq = jnp.round(xq * FP_SCALE) * INV_FP_SCALE              # round_fixed_point(input)

    # ---- stage 2: depthwise dilated conv (groups=C_IN) as ONE MXU matmul ----
    # Block-diagonal weight makes the grouped conv a dense (4,36)@(36,512) matmul.
    dw = jnp.dot(wbd_ref[...], xq,
                 preferred_element_type=jnp.float32,
                 precision=jax.lax.Precision.HIGHEST)         # (C_IN, 512)

    # The 1x1 Conv2dShift quantizes *its* input too (keep both rounds).
    dw = jnp.round(dw * FP_SCALE) * INV_FP_SCALE

    # ---- stage 3: pointwise 1x1 conv as a single MXU matmul (f32 accumulate) ----
    s = jnp.dot(wpw_ref[...], dw,
                preferred_element_type=jnp.float32,
                precision=jax.lax.Precision.HIGHEST)          # (C_OUT, 512)

    # ---- stage 4: BatchNorm2d, training-mode batch statistics ----
    # Per-channel stats over (N, H, W) == the 512-wide lane axis.
    mean = jnp.mean(s, axis=-1, keepdims=True)                # (C_OUT, 1)
    var = jnp.mean((s - mean) ** 2, axis=-1, keepdims=True)   # biased variance
    y = (s - mean) * jax.lax.rsqrt(var + BN_EPS)              # gamma=1, beta=0

    # ---- lane-dense stores: batch n occupies lane columns [n*P, (n+1)*P) ----
    for n in range(N_BATCH):
        o_ref[n] = y[:, n * P_OUT:(n + 1) * P_OUT]            # (C_OUT, 256) unmasked


def dilconv_forward(x_nchw, w_dw, w_pw):
    """x_nchw: (N, C_IN, H, W); w_dw: (C_IN, KH, KW); w_pw: (C_OUT, C_IN)."""
    x_pad = jnp.pad(x_nchw.astype(jnp.float32),
                    ((0, 0), (0, 0), (PAD, PAD), (PAD, PAD)))     # (N,C,Hp,Wp)

    # Wrapper-side im2col: pure layout plumbing (fused by XLA into one producer).
    # Presents all dilated taps as one lane-dense (36, N*H*W) slab so the kernel
    # does zero slicing-induced relayouts and zero in-kernel reshapes.
    taps = [x_pad[:, :, kh * DIL:kh * DIL + H_OUT, kw * DIL:kw * DIL + W_OUT]
            for kh in range(KH) for kw in range(KW)]              # each (N,C,H,W)
    xcol = jnp.stack(taps, axis=0)                                # (9, N, C, H, W)
    xcol = jnp.transpose(xcol, (0, 2, 1, 3, 4))                   # (9, C, N, H, W)
    xcol = xcol.reshape(ROWS, NP_OUT)                             # (36, 512), row = t*C_IN + c

    # Block-diagonal depthwise weight: W_bd[c, t*C_IN + c'] = w_dw[c, t] * [c == c'].
    wd = w_dw.astype(jnp.float32).reshape(C_IN, NTAPS)            # (C_IN, 9)
    w_bd = (wd[:, :, None] * jnp.eye(C_IN, dtype=jnp.float32)[:, None, :])
    w_bd = w_bd.reshape(C_IN, ROWS)                               # (4, 36)

    out_slab = pl.pallas_call(
        dilconv_kernel,
        out_shape=jax.ShapeDtypeStruct((N_BATCH, C_OUT, P_OUT), jnp.float32),
        in_specs=[
            pl.BlockSpec(memory_space=pltpu.MemorySpace.VMEM),
            pl.BlockSpec(memory_space=pltpu.MemorySpace.VMEM),
            pl.BlockSpec(memory_space=pltpu.MemorySpace.VMEM),
        ],
        out_specs=pl.BlockSpec(memory_space=pltpu.MemorySpace.VMEM),
    )(xcol, w_bd, w_pw.astype(jnp.float32))

    # (N, C_OUT, H*W) -> (N, C_OUT, H, W): pure reshape, no transpose.
    return out_slab.reshape(N_BATCH, C_OUT, H_OUT, W_OUT)


def dilconv_reference(x, w_dw, w_pw):
    """Pure-JAX reference (same forward semantics), used for a correctness check."""
    xq = jnp.round(jnp.maximum(x.astype(jnp.float32), 0.0) * FP_SCALE) * INV_FP_SCALE
    xp = jnp.pad(xq, ((0, 0), (0, 0), (PAD, PAD), (PAD, PAD)))
    taps = jnp.stack([xp[:, :, kh * DIL:kh * DIL + H_OUT, kw * DIL:kw * DIL + W_OUT]
                      for kh in range(KH) for kw in range(KW)], axis=0)   # (9,N,C,H,W)
    wtap = w_dw.astype(jnp.float32).reshape(C_IN, NTAPS).T                # (9, C)
    dw = jnp.einsum('tnchw,tc->nchw', taps, wtap,
                    precision=jax.lax.Precision.HIGHEST)
    dw = jnp.round(dw * FP_SCALE) * INV_FP_SCALE
    s = jnp.einsum('oc,nchw->nohw', w_pw.astype(jnp.float32), dw,
                   precision=jax.lax.Precision.HIGHEST)
    mean = jnp.mean(s, axis=(0, 2, 3), keepdims=True)
    var = jnp.mean((s - mean) ** 2, axis=(0, 2, 3), keepdims=True)
    return (s - mean) * jax.lax.rsqrt(var + BN_EPS)


def make_shift_weight(key_shift, key_sign, shape):
    """Deterministic Conv2dShift parameter init + forward-time weight formation."""
    shift = jax.random.uniform(key_shift, shape, jnp.float32, minval=-10.0, maxval=-1.0)
    sign = jax.random.uniform(key_sign, shape, jnp.float32, minval=-1.0, maxval=1.0)
    shift = jnp.clip(shift, SHIFT_MIN, 0.0)          # ste.clamp(shift, *shift_range)
    shift_r = jnp.round(shift)                       # ste.round (deterministic)
    sign_r = jnp.sign(jnp.round(sign))               # ste.sign(ste.round(sign))
    return (2.0 ** shift_r) * sign_r                 # weight_ps


if __name__ == "__main__":
    key = jax.random.PRNGKey(0)
    k_sh_dw, k_sg_dw, k_sh_pw, k_sg_pw, k_x = jax.random.split(key, 5)

    # Depthwise Conv2dShift weight: (out=C_IN, in/groups=1, KH, KW)
    w_dw = make_shift_weight(k_sh_dw, k_sg_dw, (C_IN, 1, KH, KW)).reshape(C_IN, KH, KW)
    # Pointwise Conv2dShift weight: (C_OUT, C_IN, 1, 1)
    w_pw = make_shift_weight(k_sh_pw, k_sg_pw, (C_OUT, C_IN, 1, 1)).reshape(C_OUT, C_IN)

    x = jax.random.normal(k_x, (N_BATCH, C_IN, H_IN, W_IN), jnp.float32)

    out = jax.jit(dilconv_forward)(x, w_dw, w_pw)
    out = jax.block_until_ready(out)
    assert out.shape == (N_BATCH, C_OUT, H_OUT, W_OUT)

    ref = jax.jit(dilconv_reference)(x, w_dw, w_pw)
    ref = jax.block_until_ready(ref)
    assert bool(jnp.allclose(out, ref, rtol=5e-3, atol=5e-3)), "mismatch vs pure-JAX reference"

    print("KERNEL_OK")
</pallas_src>

<mosaic_0001>
module attributes {stable_mosaic.version = 11 : i64} {
  func.func @dilconv_kernel(%arg0: memref<36x512xf32, #tpu.memory_space<vmem>>, %arg1: memref<4x36xf32, #tpu.memory_space<vmem>>, %arg2: memref<8x4xf32, #tpu.memory_space<vmem>>, %arg3: memref<2x8x256xf32, #tpu.memory_space<vmem>>) attributes {dimension_semantics = [], scalar_prefetch = 0 : i64, scratch_operands = 0 : i64, tpu.core_type = #tpu.core_type<tc>} {
    %c0 = arith.constant 0 : index
    %c0_0 = arith.constant 0 : index
    %0 = vector.load %arg0[%c0, %c0_0] : memref<36x512xf32, #tpu.memory_space<vmem>>, vector<36x512xf32>
    %cst = arith.constant 0.000000e+00 : f32
    %1 = vector.broadcast %cst : f32 to vector<36x512xf32>
    %2 = arith.maximumf %0, %1 : vector<36x512xf32>
    %cst_1 = arith.constant 6.553600e+04 : f32
    %3 = vector.broadcast %cst_1 : f32 to vector<36x512xf32>
    %4 = arith.mulf %2, %3 : vector<36x512xf32>
    %5 = math.roundeven %4 : vector<36x512xf32>
    %cst_2 = arith.constant 1.52587891E-5 : f32
    %6 = vector.broadcast %cst_2 : f32 to vector<36x512xf32>
    %7 = arith.mulf %5, %6 : vector<36x512xf32>
    %c0_3 = arith.constant 0 : index
    %c0_4 = arith.constant 0 : index
    %8 = vector.load %arg1[%c0_3, %c0_4] : memref<4x36xf32, #tpu.memory_space<vmem>>, vector<4x36xf32>
    %cst_5 = arith.constant dense<0.000000e+00> : vector<4x512xf32>
    %9 = tpu.matmul %8, %7, %cst_5 {dimension_numbers = #tpu.dot_dimension_numbers<[1], [0], [0], [1], [0, 0, 1, 1], [], []>, precision = #tpu.contract_precision<fp32>} : vector<4x36xf32>, vector<36x512xf32>, vector<4x512xf32> -> vector<4x512xf32>
    %cst_6 = arith.constant 6.553600e+04 : f32
    %10 = vector.broadcast %cst_6 : f32 to vector<4x512xf32>
    %11 = arith.mulf %9, %10 : vector<4x512xf32>
    %12 = math.roundeven %11 : vector<4x512xf32>
    %cst_7 = arith.constant 1.52587891E-5 : f32
    %13 = vector.broadcast %cst_7 : f32 to vector<4x512xf32>
    %14 = arith.mulf %12, %13 : vector<4x512xf32>
    %c0_8 = arith.constant 0 : index
    %c0_9 = arith.constant 0 : index
    %15 = vector.load %arg2[%c0_8, %c0_9] : memref<8x4xf32, #tpu.memory_space<vmem>>, vector<8x4xf32>
    %cst_10 = arith.constant dense<0.000000e+00> : vector<8x512xf32>
    %16 = tpu.matmul %15, %14, %cst_10 {dimension_numbers = #tpu.dot_dimension_numbers<[1], [0], [0], [1], [0, 0, 1, 1], [], []>, precision = #tpu.contract_precision<fp32>} : vector<8x4xf32>, vector<4x512xf32>, vector<8x512xf32> -> vector<8x512xf32>
    %cst_11 = arith.constant dense<0.000000e+00> : vector<8xf32>
    %17 = vector.multi_reduction <add>, %16, %cst_11 [1] : vector<8x512xf32> to vector<8xf32>
    %18 = vector.shape_cast %17 : vector<8xf32> to vector<8x1xf32>
    %cst_12 = arith.constant 5.120000e+02 : f32
    %19 = vector.broadcast %cst_12 : f32 to vector<8x1xf32>
    %20 = arith.divf %18, %19 : vector<8x1xf32>
    %21 = vector.broadcast %20 : vector<8x1xf32> to vector<8x512xf32>
    %22 = arith.subf %16, %21 : vector<8x512xf32>
    %23 = arith.mulf %22, %22 : vector<8x512xf32>
    %cst_13 = arith.constant dense<0.000000e+00> : vector<8xf32>
    %24 = vector.multi_reduction <add>, %23, %cst_13 [1] : vector<8x512xf32> to vector<8xf32>
    %25 = vector.shape_cast %24 : vector<8xf32> to vector<8x1xf32>
    %cst_14 = arith.constant 5.120000e+02 : f32
    %26 = vector.broadcast %cst_14 : f32 to vector<8x1xf32>
    %27 = arith.divf %25, %26 : vector<8x1xf32>
    %28 = vector.broadcast %20 : vector<8x1xf32> to vector<8x512xf32>
    %29 = arith.subf %16, %28 : vector<8x512xf32>
    %cst_15 = arith.constant 9.99999974E-6 : f32
    %30 = vector.broadcast %cst_15 : f32 to vector<8x1xf32>
    %31 = arith.addf %27, %30 : vector<8x1xf32>
    %32 = math.rsqrt %31 : vector<8x1xf32>
    %33 = vector.broadcast %32 : vector<8x1xf32> to vector<8x512xf32>
    %34 = arith.mulf %29, %33 : vector<8x512xf32>
    %35 = vector.extract_strided_slice %34 {offsets = [0, 0], sizes = [8, 256], strides = [1, 1]} : vector<8x512xf32> to vector<8x256xf32>
    %c0_16 = arith.constant 0 : index
    %c0_17 = arith.constant 0 : index
    %c0_18 = arith.constant 0 : index
    %36 = vector.load %arg3[%c0_16, %c0_17, %c0_18] : memref<2x8x256xf32, #tpu.memory_space<vmem>>, vector<1x8x256xf32>
    %37 = vector.shape_cast %36 : vector<1x8x256xf32> to vector<8x256xf32>
    %38 = vector.shape_cast %35 : vector<8x256xf32> to vector<1x8x256xf32>
    tpu.vector_store %arg3[%c0_16, %c0_17, %c0_18], %38 {strides = array<i32>} : memref<2x8x256xf32, #tpu.memory_space<vmem>>, vector<1x8x256xf32>,
    %39 = vector.extract_strided_slice %34 {offsets = [0, 256], sizes = [8, 256], strides = [1, 1]} : vector<8x512xf32> to vector<8x256xf32>
    %c1 = arith.constant 1 : index
    %c0_19 = arith.constant 0 : index
    %c0_20 = arith.constant 0 : index
    %40 = vector.load %arg3[%c1, %c0_19, %c0_20] : memref<2x8x256xf32, #tpu.memory_space<vmem>>, vector<1x8x256xf32>
    %41 = vector.shape_cast %40 : vector<1x8x256xf32> to vector<8x256xf32>
    %42 = vector.shape_cast %39 : vector<8x256xf32> to vector<1x8x256xf32>
    tpu.vector_store %arg3[%c1, %c0_19, %c0_20], %42 {strides = array<i32>} : memref<2x8x256xf32, #tpu.memory_space<vmem>>, vector<1x8x256xf32>,
    return
  }
}

</mosaic_0001>

<llo_original>
// kernel: mul.8
$region0: #{mul.8}
  %s0 = inlined_call_operand.vmem [shape: f32[4,3,3], index: 0, kind: input, shape index: {}]
  %s1 = inlined_call_operand.vmem [shape: f32[4,9], index: 1, kind: output, shape index: {}]
  $region1: #{mul.8} parent=0
    #allocation0 [shape = 'u8[4096]{0}', space=vmem, size = 0x1000, scoped, tag = 'scoped mem for output reshape']
    #allocation1 [shape = 'u8[16384]{0}', space=vmem, size = 0x4000, scoped, tag = 'scoped mem for input reshape']
    %s3 = sshllo.u32 0, 4
    %s4 = smul.addr 4, 3
    %s5 = scalar_lea.vmem %s0, %s4
    %v6 = vld [vmem:[%s5] sm:%s3]
    %s7 = scalar_lea.vmem [#allocation1], 24
    %8 = vst [vmem:[%s7] sm:%s3] %v6
    %s9 = smul.addr 4, 2
    %s10 = scalar_lea.vmem %s0, %s9
    %v11 = vld [vmem:[%s10] sm:%s3]
    %s12 = scalar_lea.vmem [#allocation1], 16
    %13 = vst [vmem:[%s12] sm:%s3] %v11
    %s14 = scalar_lea.vmem %s0, 4
    %v15 = vld [vmem:[%s14] sm:%s3]
    %s16 = scalar_lea.vmem [#allocation1], 8
    %17 = vst [vmem:[%s16] sm:%s3] %v15
    %v18 = vld [vmem:[%s0] sm:%s3]
    %19 = vst [vmem:[#allocation1] sm:%s3] %v18
    %v20 = vld [vmem:[#allocation1] ss:$8 sm:$0xf]
    %vm21 = vcmask 23552
    %22 = vst.msk [vmem:[#allocation0] sm:$0xf] %vm21, %v20
    %s23 = scalar_lea.vmem [#allocation1], 2
    %v24 = vld [vmem:[%s23] ss:$8 sm:$0xf]
    %25 = vrot.lane.b32.xlu0 %v24, 6
    %v26 = vpop.permute.xlu0 %25
    %vm27 = vcmask 72752
    %28 = vst.msk [vmem:[#allocation0] sm:$0xf] %vm27, %v26
    %s29 = scalar_lea.vmem [#allocation1], 1
    %v30 = vld [vmem:[%s29] ss:$8 sm:$0xf]
    %31 = vrot.lane.b32.xlu0 %v30, 3
    %v32 = vpop.permute.xlu0 %31
    %vm33 = vcmask 48152
    %34 = vst.msk [vmem:[#allocation0] sm:$0xf] %vm33, %v32
    %s36 = sshllo.u32 0, 4
    %v38 = vld [vmem:[#allocation0] sm:%s36]
    %s39 = sshllo.u32 0, 4
    %40 = vst [vmem:[%s1] sm:%s39] %v38

// kernel: dilconv_forward.1
$region0: #{dilconv_forward.1}
  #allocation0 [shape = 'u32[]', space=smem, size = 0x4, offset = 0x4, fixed_abs, tag = 'smem constant byte address 0x4 - core index']
  #allocation1 [shape = 'u32[144,128]{1,0:T(1,128)}', space=vmem, size = 0x12000, scoped, tag = 'internal scratch']
  %s0 = inlined_call_operand.vmem [shape: f32[36,512], index: 0, kind: input, shape index: {}]
  %s1 = inlined_call_operand.vmem [shape: f32[4,36], index: 1, kind: input, shape index: {}]
  %s2 = inlined_call_operand.vmem [shape: f32[8,4], index: 2, kind: input, shape index: {}]
  %s3 = inlined_call_operand.vmem [shape: f32[2,8,256], index: 3, kind: output, shape index: {}]
  %s4 = sld [smem:[#allocation0]]
  $region22: #{dilconv_forward.1} parent=0
    _
  %s6 = ssub.s32 1, %s4
  %s7 = scalar_select 0, %s6, %s4
  // Predicated region
  $region2: #{dilconv_forward.1} parent=0 // pred_check
    _
  $region3: #{dilconv_forward.1} parent=0 // pred_check_branch
    %9 = sbr.rel (0) target = $region5
  $region4: #{dilconv_forward.1} parent=0 // pred_region
    _
  $region5: #{dilconv_forward.1} parent=0 // pred_fallthru
    _
  // Predicated region
  $region6: #{dilconv_forward.1} parent=0 // pred_check
    _
  $region7: #{dilconv_forward.1} parent=0 // pred_check_branch
    %11 = sbr.rel (0) target = $region9
  $region8: #{dilconv_forward.1} parent=0 // pred_region
    _
  $region9: #{dilconv_forward.1} parent=0 // pred_fallthru
    _
  // Predicated region
  $region10: #{dilconv_forward.1} parent=0 // pred_check
    _
  $region11: #{dilconv_forward.1} parent=0 // pred_check_branch
    %13 = sbr.rel (0) target = $region13
  $region12: #{dilconv_forward.1} parent=0 // pred_region
    _
  $region13: #{dilconv_forward.1} parent=0 // pred_fallthru
    _
  %v14 = vld [vmem:[%s0] sm:$0xff]
  %v15 = vld [vmem:[%s0 + $0x8] sm:$0xff]
  %v16 = vld [vmem:[%s0 + $0x10] sm:$0xff]
  %v17 = vld [vmem:[%s0 + $0x18] sm:$0xff]
  %v18 = vld [vmem:[%s0 + $0x20] sm:$0xff]
  %v19 = vld [vmem:[%s0 + $0x28] sm:$0xff]
  %v20 = vld [vmem:[%s0 + $0x30] sm:$0xff]
  %v21 = vld [vmem:[%s0 + $0x38] sm:$0xff]
  %v22 = vld [vmem:[%s0 + $0x40] sm:$0xff]
  %v23 = vld [vmem:[%s0 + $0x48] sm:$0xff]
  %v24 = vld [vmem:[%s0 + $0x50] sm:$0xff]
  %v25 = vld [vmem:[%s0 + $0x58] sm:$0xff]
  %v26 = vld [vmem:[%s0 + $0x60] sm:$0xff]
  %v27 = vld [vmem:[%s0 + $0x68] sm:$0xff]
  %v28 = vld [vmem:[%s0 + $0x70] sm:$0xff]
  %v29 = vld [vmem:[%s0 + $0x78] sm:$0xff]
  %v30 = vld [vmem:[%s0 + $0x80] sm:$0xf]
  %v31 = vld [vmem:[%s0 + $0x88] sm:$0xf]
  %v32 = vld [vmem:[%s0 + $0x90] sm:$0xf]
  %v33 = vld [vmem:[%s0 + $0x98] sm:$0xf]
  %v34 = vmax.f32 %v14, 0.0
  %v35 = vmax.f32 %v15, 0.0
  %v36 = vmax.f32 %v16, 0.0
  %v37 = vmax.f32 %v17, 0.0
  %v38 = vmax.f32 %v18, 0.0
  %v39 = vmax.f32 %v19, 0.0
  %v40 = vmax.f32 %v20, 0.0
  %v41 = vmax.f32 %v21, 0.0
  %v42 = vmax.f32 %v22, 0.0
  %v43 = vmax.f32 %v23, 0.0
  %v44 = vmax.f32 %v24, 0.0
  %v45 = vmax.f32 %v25, 0.0
  %v46 = vmax.f32 %v26, 0.0
  %v47 = vmax.f32 %v27, 0.0
  %v48 = vmax.f32 %v28, 0.0
  %v49 = vmax.f32 %v29, 0.0
  %v50 = vmax.f32 %v30, 0.0
  %v51 = vmax.f32 %v31, 0.0
  %v52 = vmax.f32 %v32, 0.0
  %v53 = vmax.f32 %v33, 0.0
  %v54 = vmul.f32 %v34, 65536.0
  %v55 = vmul.f32 %v35, 65536.0
  %v56 = vmul.f32 %v36, 65536.0
  %v57 = vmul.f32 %v37, 65536.0
  %v58 = vmul.f32 %v38, 65536.0
  %v59 = vmul.f32 %v39, 65536.0
  %v60 = vmul.f32 %v40, 65536.0
  %v61 = vmul.f32 %v41, 65536.0
  %v62 = vmul.f32 %v42, 65536.0
  %v63 = vmul.f32 %v43, 65536.0
  %v64 = vmul.f32 %v44, 65536.0
  %v65 = vmul.f32 %v45, 65536.0
  %v66 = vmul.f32 %v46, 65536.0
  %v67 = vmul.f32 %v47, 65536.0
  %v68 = vmul.f32 %v48, 65536.0
  %v69 = vmul.f32 %v49, 65536.0
  %v70 = vmul.f32 %v50, 65536.0
  %v71 = vmul.f32 %v51, 65536.0
  %v72 = vmul.f32 %v52, 65536.0
  %v73 = vmul.f32 %v53, 65536.0
  %v74 = vround.ne.pseudo %v54
  %v75 = vround.ne.pseudo %v55
  %v76 = vround.ne.pseudo %v56
  %v77 = vround.ne.pseudo %v57
  %v78 = vround.ne.pseudo %v58
  %v79 = vround.ne.pseudo %v59
  %v80 = vround.ne.pseudo %v60
  %v81 = vround.ne.pseudo %v61
  %v82 = vround.ne.pseudo %v62
  %v83 = vround.ne.pseudo %v63
  %v84 = vround.ne.pseudo %v64
  %v85 = vround.ne.pseudo %v65
  %v86 = vround.ne.pseudo %v66
  %v87 = vround.ne.pseudo %v67
  %v88 = vround.ne.pseudo %v68
  %v89 = vround.ne.pseudo %v69
  %v90 = vround.ne.pseudo %v70
  %v91 = vround.ne.pseudo %v71
  %v92 = vround.ne.pseudo %v72
  %v93 = vround.ne.pseudo %v73
  %v94 = vmul.f32 %v74, 1.5258789e-05
  %v95 = vmul.f32 %v75, 1.5258789e-05
  %v96 = vmul.f32 %v76, 1.5258789e-05
  %v97 = vmul.f32 %v77, 1.5258789e-05
  %v98 = vmul.f32 %v78, 1.5258789e-05
  %v99 = vmul.f32 %v79, 1.5258789e-05
  %v100 = vmul.f32 %v80, 1.5258789e-05
  %v101 = vmul.f32 %v81, 1.5258789e-05
  %v102 = vmul.f32 %v82, 1.5258789e-05
  %v103 = vmul.f32 %v83, 1.5258789e-05
  %v104 = vmul.f32 %v84, 1.5258789e-05
  %v105 = vmul.f32 %v85, 1.5258789e-05
  %v106 = vmul.f32 %v86, 1.5258789e-05
  %v107 = vmul.f32 %v87, 1.5258789e-05
  %v108 = vmul.f32 %v88, 1.5258789e-05
  %v109 = vmul.f32 %v89, 1.5258789e-05
  %v110 = vmul.f32 %v90, 1.5258789e-05
  %v111 = vmul.f32 %v91, 1.5258789e-05
  %v112 = vmul.f32 %v92, 1.5258789e-05
  %v113 = vmul.f32 %v93, 1.5258789e-05
  %v114 = vld [vmem:[%s1] sm:$0xf]
  %vm115 = vcmask 293888
  %v117 = vsel %vm115, %v114, 0
  %vm119 = vcmask 1043456
  %v121 = vsel %vm119, %v110, 0
  %v124 = vsel %vm119, %v111, 0
  %v127 = vsel %vm119, %v112, 0
  %v130 = vsel %vm119, %v113, 0
  %v132 = vand.u32 %v95, 4294901760
  %133 = vmatprep.subr.mxu0 %v132
  %v134 = vand.u32 %v94, 4294901760
  %135 = vmatpush1.msra.mxu0 %v134
  %v136 = vand.u32 %v99, 4294901760
  %137 = vmatprep.subr.mxu0 %v136
  %v138 = vand.u32 %v98, 4294901760
  %139 = vmatpush1.msra.mxu0 %v138
  %v140 = vand.u32 %v103, 4294901760
  %141 = vmatprep.subr.mxu0 %v140
  %v142 = vand.u32 %v102, 4294901760
  %143 = vmatpush1.msra.mxu0 %v142
  %v144 = vand.u32 %v107, 4294901760
  %145 = vmatprep.subr.mxu0 %v144
  %v146 = vand.u32 %v106, 4294901760
  %147 = vmatpush1.msra.mxu0 %v146
  %v148 = vand.u32 %v124, 4294901760
  %149 = vmatprep.subr.mxu0 %v148
  %v150 = vand.u32 %v121, 4294901760
  %151 = vmatpush1.msra.mxu0 %v150
  %152 = vmatprep.subr.mxu0 0.0
  %153 = vmatpush1.msra.mxu0 0.0
  %154 = vmatprep.subr.mxu0 0.0
  %155 = vmatpush1.msra.mxu0 0.0
  %156 = vmatprep.subr.mxu0 0.0
  %157 = vmatpush1.msra.mxu0 0.0
  %158 = vmatprep.subr.mxu0 0.0
  %159 = vmatpush1.msra.mxu0 0.0
  %160 = vmatprep.subr.mxu0 0.0
  %161 = vmatpush1.msra.mxu0 0.0
  %162 = vmatprep.subr.mxu0 0.0
  %163 = vmatpush1.msra.mxu0 0.0
  %164 = vmatprep.subr.mxu0 0.0
  %165 = vmatpush1.msra.mxu0 0.0
  %166 = vmatprep.subr.mxu0 0.0
  %167 = vmatpush1.msra.mxu0 0.0
  %168 = vmatprep.subr.mxu0 0.0
  %169 = vmatpush1.msra.mxu0 0.0
  %170 = vmatprep.subr.mxu0 0.0
  %171 = vmatpush1.msra.mxu0 0.0
  %172 = vmatprep.subr.mxu0 0.0
  %173 = vmatpush1.msra.mxu0 0.0
  %174 = vmatprep.subr.mxu0 0.0
  %175 = vmatpush1.msra.mxu0 0.0
  %176 = vmatprep.subr.mxu0 0.0
  %177 = vmatpush1.msra.mxu0 0.0
  %178 = vmatprep.subr.mxu0 0.0
  %179 = vmatpush1.msra.mxu0 0.0
  %180 = vmatprep.subr.mxu0 0.0
  %181 = vmatpush1.msra.mxu0 0.0
  %182 = vmatprep.subr.mxu0 0.0
  %183 = vmatpush1.msra.mxu0 0.0
  %184 = vmatprep.subr.mxu0 0.0
  %185 = vmatpush1.msra.mxu0 0.0
  %186 = vmatprep.subr.mxu0 0.0
  %187 = vmatpush1.msra.mxu0 0.0
  %188 = vmatprep.subr.mxu0 0.0
  %189 = vmatpush1.msra.mxu0 0.0
  %190 = vmatprep.subr.mxu0 0.0
  %191 = vmatpush1.msra.mxu0 0.0
  %192 = vmatprep.subr.mxu0 0.0
  %193 = vmatpush1.msra.mxu0 0.0
  %194 = vmatprep.subr.mxu0 0.0
  %195 = vmatpush1.msra.mxu0 0.0
  %196 = vmatprep.subr.mxu0 0.0
  %197 = vmatpush1.msra.mxu0 0.0
  %198 = vmatprep.subr.mxu0 0.0
  %199 = vmatpush1.msra.mxu0 0.0
  %200 = vmatprep.subr.mxu0 0.0
  %201 = vmatpush1.msra.mxu0 0.0
  %202 = vmatprep.subr.mxu0 0.0
  %203 = vmatpush1.msra.mxu0 0.0
  %204 = vmatprep.subr.mxu0 0.0
  %205 = vmatpush1.msra.mxu0 0.0
  %206 = vmatprep.mubr.f32.mxu0 0.0
  %v207 = vand.u32 %v117, 4294901760
  %v208 = vsub.f32 %v117, %v207
  %v209 = vand.u32 %v208, 4294901760
  %v210 = vsub.f32 %v208, %v209
  %v211 = vand.u32 %v210, 4294901760
  %212 = vmatmul.mubr.f32.gmra.mrb[0].mxu0 %v211
  %v213 = vpop.f32.mrb[0].mxu0
  %v214 = vadd.f32 0.0, %v213
  %v215 = vpop.f32.mrb[0].mxu0
  %v216 = vadd.f32 0.0, %v215
  %217 = vdwg.mxu0
  %v218 = vand.u32 %v95, 4294901760
  %v219 = vsub.f32 %v95, %v218
  %v220 = vand.u32 %v219, 4294901760
  %v221 = vsub.f32 %v219, %v220
  %v222 = vand.u32 %v221, 4294901760
  %223 = vmatprep.subr.mxu0 %v222
  %v224 = vand.u32 %v94, 4294901760
  %v225 = vsub.f32 %v94, %v224
  %v226 = vand.u32 %v225, 4294901760
  %v227 = vsub.f32 %v225, %v226
  %v228 = vand.u32 %v227, 4294901760
  %229 = vmatpush1.msra.mxu0 %v228
  %v230 = vand.u32 %v99, 4294901760
  %v231 = vsub.f32 %v99, %v230
  %v232 = vand.u32 %v231, 4294901760
  %v233 = vsub.f32 %v231, %v232
  %v234 = vand.u32 %v233, 4294901760
  %235 = vmatprep.subr.mxu0 %v234
  %v236 = vand.u32 %v98, 4294901760
  %v237 = vsub.f32 %v98, %v236
  %v238 = vand.u32 %v237, 4294901760
  %v239 = vsub.f32 %v237, %v238
  %v240 = vand.u32 %v239, 4294901760
  %241 = vmatpush1.msra.mxu0 %v240
  %v242 = vand.u32 %v103, 4294901760
  %v243 = vsub.f32 %v103, %v242
  %v244 = vand.u32 %v243, 4294901760
  %v245 = vsub.f32 %v243, %v244
  %v246 = vand.u32 %v245, 4294901760
  %247 = vmatprep.subr.mxu0 %v246
  %v248 = vand.u32 %v102, 4294901760
  %v249 = vsub.f32 %v102, %v248
  %v250 = vand.u32 %v249, 4294901760
  %v251 = vsub.f32 %v249, %v250
  %v252 = vand.u32 %v251, 4294901760
  %253 = vmatpush1.msra.mxu0 %v252
  %v254 = vand.u32 %v107, 4294901760
  %v255 = vsub.f32 %v107, %v254
  %v256 = vand.u32 %v255, 4294901760
  %v257 = vsub.f32 %v255, %v256
  %v258 = vand.u32 %v257, 4294901760
  %259 = vmatprep.subr.mxu0 %v258
  %v260 = vand.u32 %v106, 4294901760
  %v261 = vsub.f32 %v106, %v260
  %v262 = vand.u32 %v261, 4294901760
  %v263 = vsub.f32 %v261, %v262
  %v264 = vand.u32 %v263, 4294901760
  %265 = vmatpush1.msra.mxu0 %v264
  %v266 = vand.u32 %v124, 4294901760
  %v267 = vsub.f32 %v124, %v266
  %v268 = vand.u32 %v267, 4294901760
  %v269 = vsub.f32 %v267, %v268
  %v270 = vand.u32 %v269, 4294901760
  %271 = vmatprep.subr.mxu0 %v270
  %v272 = vand.u32 %v121, 4294901760
  %v273 = vsub.f32 %v121, %v272
  %v274 = vand.u32 %v273, 4294901760
  %v275 = vsub.f32 %v273, %v274
  %v276 = vand.u32 %v275, 4294901760
  %277 = vmatpush1.msra.mxu0 %v276
  %278 = vmatprep.subr.mxu0 0.0
  %279 = vmatpush1.msra.mxu0 0.0
  %280 = vmatprep.subr.mxu0 0.0
  %281 = vmatpush1.msra.mxu0 0.0
  %282 = vmatprep.subr.mxu0 0.0
  %283 = vmatpush1.msra.mxu0 0.0
  %284 = vmatprep.subr.mxu0 0.0
  %285 = vmatpush1.msra.mxu0 0.0
  %286 = vmatprep.subr.mxu0 0.0
  %287 = vmatpush1.msra.mxu0 0.0
  %288 = vmatprep.subr.mxu0 0.0
  %289 = vmatpush1.msra.mxu0 0.0
  %290 = vmatprep.subr.mxu0 0.0
  %291 = vmatpush1.msra.mxu0 0.0
  %292 = vmatprep.subr.mxu0 0.0
  %293 = vmatpush1.msra.mxu0 0.0
  %294 = vmatprep.subr.mxu0 0.0
  %295 = vmatpush1.msra.mxu0 0.0
  %296 = vmatprep.subr.mxu0 0.0
  %297 = vmatpush1.msra.mxu0 0.0
  %298 = vmatprep.subr.mxu0 0.0
  %299 = vmatpush1.msra.mxu0 0.0
  %300 = vmatprep.subr.mxu0 0.0
  %301 = vmatpush1.msra.mxu0 0.0
  %302 = vmatprep.subr.mxu0 0.0
  %303 = vmatpush1.msra.mxu0 0.0
  %304 = vmatprep.subr.mxu0 0.0
  %305 = vmatpush1.msra.mxu0 0.0
  %306 = vmatprep.subr.mxu0 0.0
  %307 = vmatpush1.msra.mxu0 0.0
  %308 = vmatprep.subr.mxu0 0.0
  %309 = vmatpush1.msra.mxu0 0.0
  %310 = vmatprep.subr.mxu0 0.0
  %311 = vmatpush1.msra.mxu0 0.0
  %312 = vmatprep.subr.mxu0 0.0
  %313 = vmatpush1.msra.mxu0 0.0
  %314 = vmatprep.subr.mxu0 0.0
  %315 = vmatpush1.msra.mxu0 0.0
  %316 = vmatprep.subr.mxu0 0.0
  %317 = vmatpush1.msra.mxu0 0.0
  %318 = vmatprep.subr.mxu0 0.0
  %319 = vmatpush1.msra.mxu0 0.0
  %320 = vmatprep.subr.mxu0 0.0
  %321 = vmatpush1.msra.mxu0 0.0
  %322 = vmatprep.subr.mxu0 0.0
  %323 = vmatpush1.msra.mxu0 0.0
  %324 = vmatprep.subr.mxu0 0.0
  %325 = vmatpush1.msra.mxu0 0.0
  %326 = vmatprep.subr.mxu0 0.0
  %327 = vmatpush1.msra.mxu0 0.0
  %328 = vmatprep.subr.mxu0 0.0
  %329 = vmatpush1.msra.mxu0 0.0
  %330 = vmatprep.subr.mxu0 0.0
  %331 = vmatpush1.msra.mxu0 0.0
  %332 = vmatprep.mubr.f32.mxu0 0.0
  %v333 = vand.u32 %v117, 4294901760
  %334 = vmatmul.mubr.f32.gmra.mrb[0].mxu0 %v333
  %v335 = vpop.f32.mrb[0].mxu0
  %v336 = vadd.f32 %v214, %v335
  %v337 = vpop.f32.mrb[0].mxu0
  %v338 = vadd.f32 %v216, %v337
  %339 = vdwg.mxu0
  %v340 = vand.u32 %v95, 4294901760
  %v341 = vsub.f32 %v95, %v340
  %342 = vmatprep.subr.mxu0 %v341
  %v343 = vand.u32 %v94, 4294901760
  %v344 = vsub.f32 %v94, %v343
  %345 = vmatpush1.msra.mxu0 %v344
  %v346 = vand.u32 %v99, 4294901760
  %v347 = vsub.f32 %v99, %v346
  %348 = vmatprep.subr.mxu0 %v347
  %v349 = vand.u32 %v98, 4294901760
  %v350 = vsub.f32 %v98, %v349
  %351 = vmatpush1.msra.mxu0 %v350
  %v352 = vand.u32 %v103, 4294901760
  %v353 = vsub.f32 %v103, %v352
  %354 = vmatprep.subr.mxu0 %v353
  %v355 = vand.u32 %v102, 4294901760
  %v356 = vsub.f32 %v102, %v355
  %357 = vmatpush1.msra.mxu0 %v356
  %v358 = vand.u32 %v107, 4294901760
  %v359 = vsub.f32 %v107, %v358
  %360 = vmatprep.subr.mxu0 %v359
  %v361 = vand.u32 %v106, 4294901760
  %v362 = vsub.f32 %v106, %v361
  %363 = vmatpush1.msra.mxu0 %v362
  %v364 = vand.u32 %v124, 4294901760
  %v365 = vsub.f32 %v124, %v364
  %366 = vmatprep.subr.mxu0 %v365
  %v367 = vand.u32 %v121, 4294901760
  %v368 = vsub.f32 %v121, %v367
  %369 = vmatpush1.msra.mxu0 %v368
  %370 = vmatprep.subr.mxu0 0.0
  %371 = vmatpush1.msra.mxu0 0.0
  %372 = vmatprep.subr.mxu0 0.0
  %373 = vmatpush1.msra.mxu0 0.0
  %374 = vmatprep.subr.mxu0 0.0
  %375 = vmatpush1.msra.mxu0 0.0
  %376 = vmatprep.subr.mxu0 0.0
  %377 = vmatpush1.msra.mxu0 0.0
  %378 = vmatprep.subr.mxu0 0.0
  %379 = vmatpush1.msra.mxu0 0.0
  %380 = vmatprep.subr.mxu0 0.0
  %381 = vmatpush1.msra.mxu0 0.0
  %382 = vmatprep.subr.mxu0 0.0
  %383 = vmatpush1.msra.mxu0 0.0
  %384 = vmatprep.subr.mxu0 0.0
  %385 = vmatpush1.msra.mxu0 0.0
  %386 = vmatprep.subr.mxu0 0.0
  %387 = vmatpush1.msra.mxu0 0.0
  %388 = vmatprep.subr.mxu0 0.0
  %389 = vmatpush1.msra.mxu0 0.0
  %390 = vmatprep.subr.mxu0 0.0
  %391 = vmatpush1.msra.mxu0 0.0
  %392 = vmatprep.subr.mxu0 0.0
  %393 = vmatpush1.msra.mxu0 0.0
  %394 = vmatprep.subr.mxu0 0.0
  %395 = vmatpush1.msra.mxu0 0.0
  %396 = vmatprep.subr.mxu0 0.0
  %397 = vmatpush1.msra.mxu0 0.0
  %398 = vmatprep.subr.mxu0 0.0
  %399 = vmatpush1.msra.mxu0 0.0
  %400 = vmatprep.subr.mxu0 0.0
  %401 = vmatpush1.msra.mxu0 0.0
  %402 = vmatprep.subr.mxu0 0.0
  %403 = vmatpush1.msra.mxu0 0.0
  %404 = vmatprep.subr.mxu0 0.0
  %405 = vmatpush1.msra.mxu0 0.0
  %406 = vmatprep.subr.mxu0 0.0
  %407 = vmatpush1.msra.mxu0 0.0
  %408 = vmatprep.subr.mxu0 0.0
  %409 = vmatpush1.msra.mxu0 0.0
  %410 = vmatprep.subr.mxu0 0.0
  %411 = vmatpush1.msra.mxu0 0.0
  %412 = vmatprep.subr.mxu0 0.0
  %413 = vmatpush1.msra.mxu0 0.0
  %414 = vmatprep.subr.mxu0 0.0
  %415 = vmatpush1.msra.mxu0 0.0
  %416 = vmatprep.subr.mxu0 0.0
  %417 = vmatpush1.msra.mxu0 0.0
  %418 = vmatprep.subr.mxu0 0.0
  %419 = vmatpush1.msra.mxu0 0.0
  %420 = vmatprep.subr.mxu0 0.0
  %421 = vmatpush1.msra.mxu0 0.0
  %422 = vmatprep.subr.mxu0 0.0
  %423 = vmatpush1.msra.mxu0 0.0
  %424 = vmatprep.mubr.f32.mxu0 0.0
  %v425 = vand.u32 %v117, 4294901760
  %v426 = vsub.f32 %v117, %v425
  %427 = vmatmul.mubr.f32.gmra.mrb[0].mxu0 %v426
  %v428 = vpop.f32.mrb[0].mxu0
  %v429 = vadd.f32 %v336, %v428
  %v430 = vpop.f32.mrb[0].mxu0
  %v431 = vadd.f32 %v338, %v430
  %432 = vdwg.mxu0
  %v433 = vand.u32 %v95, 4294901760
  %434 = vmatprep.subr.mxu0 %v433
  %v435 = vand.u32 %v94, 4294901760
  %436 = vmatpush1.msra.mxu0 %v435
  %v437 = vand.u32 %v99, 4294901760
  %438 = vmatprep.subr.mxu0 %v437
  %v439 = vand.u32 %v98, 4294901760
  %440 = vmatpush1.msra.mxu0 %v439
  %v441 = vand.u32 %v103, 4294901760
  %442 = vmatprep.subr.mxu0 %v441
  %v443 = vand.u32 %v102, 4294901760
  %444 = vmatpush1.msra.mxu0 %v443
  %v445 = vand.u32 %v107, 4294901760
  %446 = vmatprep.subr.mxu0 %v445
  %v447 = vand.u32 %v106, 4294901760
  %448 = vmatpush1.msra.mxu0 %v447
  %v449 = vand.u32 %v124, 4294901760
  %450 = vmatprep.subr.mxu0 %v449
  %v451 = vand.u32 %v121, 4294901760
  %452 = vmatpush1.msra.mxu0 %v451
  %453 = vmatprep.subr.mxu0 0.0
  %454 = vmatpush1.msra.mxu0 0.0
  %455 = vmatprep.subr.mxu0 0.0
  %456 = vmatpush1.msra.mxu0 0.0
  %457 = vmatprep.subr.mxu0 0.0
  %458 = vmatpush1.msra.mxu0 0.0
  %459 = vmatprep.subr.mxu0 0.0
  %460 = vmatpush1.msra.mxu0 0.0
  %461 = vmatprep.subr.mxu0 0.0
  %462 = vmatpush1.msra.mxu0 0.0
  %463 = vmatprep.subr.mxu0 0.0
  %464 = vmatpush1.msra.mxu0 0.0
  %465 = vmatprep.subr.mxu0 0.0
  %466 = vmatpush1.msra.mxu0 0.0
  %467 = vmatprep.subr.mxu0 0.0
  %468 = vmatpush1.msra.mxu0 0.0
  %469 = vmatprep.subr.mxu0 0.0
  %470 = vmatpush1.msra.mxu0 0.0
  %471 = vmatprep.subr.mxu0 0.0
  %472 = vmatpush1.msra.mxu0 0.0
  %473 = vmatprep.subr.mxu0 0.0
  %474 = vmatpush1.msra.mxu0 0.0
  %475 = vmatprep.subr.mxu0 0.0
  %476 = vmatpush1.msra.mxu0 0.0
  %477 = vmatprep.subr.mxu0 0.0
  %478 = vmatpush1.msra.mxu0 0.0
  %479 = vmatprep.subr.mxu0 0.0
  %480 = vmatpush1.msra.mxu0 0.0
  %481 = vmatprep.subr.mxu0 0.0
  %482 = vmatpush1.msra.mxu0 0.0
  %483 = vmatprep.subr.mxu0 0.0
  %484 = vmatpush1.msra.mxu0 0.0
  %485 = vmatprep.subr.mxu0 0.0
  %486 = vmatpush1.msra.mxu0 0.0
  %487 = vmatprep.subr.mxu0 0.0
  %488 = vmatpush1.msra.mxu0 0.0
  %489 = vmatprep.subr.mxu0 0.0
  %490 = vmatpush1.msra.mxu0 0.0
  %491 = vmatprep.subr.mxu0 0.0
  %492 = vmatpush1.msra.mxu0 0.0
  %493 = vmatprep.subr.mxu0 0.0
  %494 = vmatpush1.msra.mxu0 0.0
  %495 = vmatprep.subr.mxu0 0.0
  %496 = vmatpush1.msra.mxu0 0.0
  %497 = vmatprep.subr.mxu0 0.0
  %498 = vmatpush1.msra.mxu0 0.0
  %499 = vmatprep.subr.mxu0 0.0
  %500 = vmatpush1.msra.mxu0 0.0
  %501 = vmatprep.subr.mxu0 0.0
  %502 = vmatpush1.msra.mxu0 0.0
  %503 = vmatprep.subr.mxu0 0.0
  %504 = vmatpush1.msra.mxu0 0.0
  %505 = vmatprep.subr.mxu0 0.0
  %506 = vmatpush1.msra.mxu0 0.0
  %507 = vmatprep.mubr.f32.mxu0 0.0
  %v508 = vand.u32 %v117, 4294901760
  %v509 = vsub.f32 %v117, %v508
  %v510 = vand.u32 %v509, 4294901760
  %511 = vmatmul.mubr.f32.gmra.mrb[0].mxu0 %v510
  %v512 = vpop.f32.mrb[0].mxu0
  %v513 = vadd.f32 %v429, %v512
  %v514 = vpop.f32.mrb[0].mxu0
  %v515 = vadd.f32 %v431, %v514
  %516 = vdwg.mxu0
  %v517 = vand.u32 %v95, 4294901760
  %v518 = vsub.f32 %v95, %v517
  %v519 = vand.u32 %v518, 4294901760
  %520 = vmatprep.subr.mxu0 %v519
  %v521 = vand.u32 %v94, 4294901760
  %v522 = vsub.f32 %v94, %v521
  %v523 = vand.u32 %v522, 4294901760
  %524 = vmatpush1.msra.mxu0 %v523
  %v525 = vand.u32 %v99, 4294901760
  %v526 = vsub.f32 %v99, %v525
  %v527 = vand.u32 %v526, 4294901760
  %528 = vmatprep.subr.mxu0 %v527
  %v529 = vand.u32 %v98, 4294901760
  %v530 = vsub.f32 %v98, %v529
  %v531 = vand.u32 %v530, 4294901760
  %532 = vmatpush1.msra.mxu0 %v531
  %v533 = vand.u32 %v103, 4294901760
  %v534 = vsub.f32 %v103, %v533
  %v535 = vand.u32 %v534, 4294901760
  %536 = vmatprep.subr.mxu0 %v535
  %v537 = vand.u32 %v102, 4294901760
  %v538 = vsub.f32 %v102, %v537
  %v539 = vand.u32 %v538, 4294901760
  %540 = vmatpush1.msra.mxu0 %v539
  %v541 = vand.u32 %v107, 4294901760
  %v542 = vsub.f32 %v107, %v541
  %v543 = vand.u32 %v542, 4294901760
  %544 = vmatprep.subr.mxu0 %v543
  %v545 = vand.u32 %v106, 4294901760
  %v546 = vsub.f32 %v106, %v545
  %v547 = vand.u32 %v546, 4294901760
  %548 = vmatpush1.msra.mxu0 %v547
  %v549 = vand.u32 %v124, 4294901760
  %v550 = vsub.f32 %v124, %v549
  %v551 = vand.u32 %v550, 4294901760
  %552 = vmatprep.subr.mxu0 %v551
  %v553 = vand.u32 %v121, 4294901760
  %v554 = vsub.f32 %v121, %v553
  %v555 = vand.u32 %v554, 4294901760
  %556 = vmatpush1.msra.mxu0 %v555
  %557 = vmatprep.subr.mxu0 0.0
  %558 = vmatpush1.msra.mxu0 0.0
  %559 = vmatprep.subr.mxu0 0.0
  %560 = vmatpush1.msra.mxu0 0.0
  %561 = vmatprep.subr.mxu0 0.0
  %562 = vmatpush1.msra.mxu0 0.0
  %563 = vmatprep.subr.mxu0 0.0
  %564 = vmatpush1.msra.mxu0 0.0
  %565 = vmatprep.subr.mxu0 0.0
  %566 = vmatpush1.msra.mxu0 0.0
  %567 = vmatprep.subr.mxu0 0.0
  %568 = vmatpush1.msra.mxu0 0.0
  %569 = vmatprep.subr.mxu0 0.0
  %570 = vmatpush1.msra.mxu0 0.0
  %571 = vmatprep.subr.mxu0 0.0
  %572 = vmatpush1.msra.mxu0 0.0
  %573 = vmatprep.subr.mxu0 0.0
  %574 = vmatpush1.msra.mxu0 0.0
  %575 = vmatprep.subr.mxu0 0.0
  %576 = vmatpush1.msra.mxu0 0.0
  %577 = vmatprep.subr.mxu0 0.0
  %578 = vmatpush1.msra.mxu0 0.0
  %579 = vmatprep.subr.mxu0 0.0
  %580 = vmatpush1.msra.mxu0 0.0
  %581 = vmatprep.subr.mxu0 0.0
  %582 = vmatpush1.msra.mxu0 0.0
  %583 = vmatprep.subr.mxu0 0.0
  %584 = vmatpush1.msra.mxu0 0.0
  %585 = vmatprep.subr.mxu0 0.0
  %586 = vmatpush1.msra.mxu0 0.0
  %587 = vmatprep.subr.mxu0 0.0
  %588 = vmatpush1.msra.mxu0 0.0
  %589 = vmatprep.subr.mxu0 0.0
  %590 = vmatpush1.msra.mxu0 0.0
  %591 = vmatprep.subr.mxu0 0.0
  %592 = vmatpush1.msra.mxu0 0.0
  %593 = vmatprep.subr.mxu0 0.0
  %594 = vmatpush1.msra.mxu0 0.0
  %595 = vmatprep.subr.mxu0 0.0
  %596 = vmatpush1.msra.mxu0 0.0
  %597 = vmatprep.subr.mxu0 0.0
  %598 = vmatpush1.msra.mxu0 0.0
  %599 = vmatprep.subr.mxu0 0.0
  %600 = vmatpush1.msra.mxu0 0.0
  %601 = vmatprep.subr.mxu0 0.0
  %602 = vmatpush1.msra.mxu0 0.0
  %603 = vmatprep.subr.mxu0 0.0
  %604 = vmatpush1.msra.mxu0 0.0
  %605 = vmatprep.subr.mxu0 0.0
  %606 = vmatpush1.msra.mxu0 0.0
  %607 = vmatprep.subr.mxu0 0.0
  %608 = vmatpush1.msra.mxu0 0.0
  %609 = vmatprep.subr.mxu0 0.0
  %610 = vmatpush1.msra.mxu0 0.0
  %611 = vmatprep.mubr.f32.mxu0 0.0
  %v612 = vand.u32 %v117, 4294901760
  %613 = vmatmul.mubr.f32.gmra.mrb[0].mxu0 %v612
  %v614 = vpop.f32.mrb[0].mxu0
  %v615 = vadd.f32 %v513, %v614
  %v616 = vpop.f32.mrb[0].mxu0
  %v617 = vadd.f32 %v515, %v616
  %618 = vdwg.mxu0
  %v619 = vand.u32 %v95, 4294901760
  %620 = vmatprep.subr.mxu0 %v619
  %v621 = vand.u32 %v94, 4294901760
  %622 = vmatpush1.msra.mxu0 %v621
  %v623 = vand.u32 %v99, 4294901760
  %624 = vmatprep.subr.mxu0 %v623
  %v625 = vand.u32 %v98, 4294901760
  %626 = vmatpush1.msra.mxu0 %v625
  %v627 = vand.u32 %v103, 4294901760
  %628 = vmatprep.subr.mxu0 %v627
  %v629 = vand.u32 %v102, 4294901760
  %630 = vmatpush1.msra.mxu0 %v629
  %v631 = vand.u32 %v107, 4294901760
  %632 = vmatprep.subr.mxu0 %v631
  %v633 = vand.u32 %v106, 4294901760
  %634 = vmatpush1.msra.mxu0 %v633
  %v635 = vand.u32 %v124, 4294901760
  %636 = vmatprep.subr.mxu0 %v635
  %v637 = vand.u32 %v121, 4294901760
  %638 = vmatpush1.msra.mxu0 %v637
  %639 = vmatprep.subr.mxu0 0.0
  %640 = vmatpush1.msra.mxu0 0.0
  %641 = vmatprep.subr.mxu0 0.0
  %642 = vmatpush1.msra.mxu0 0.0
  %643 = vmatprep.subr.mxu0 0.0
  %644 = vmatpush1.msra.mxu0 0.0
  %645 = vmatprep.subr.mxu0 0.0
  %646 = vmatpush1.msra.mxu0 0.0
  %647 = vmatprep.subr.mxu0 0.0
  %648 = vmatpush1.msra.mxu0 0.0
  %649 = vmatprep.subr.mxu0 0.0
  %650 = vmatpush1.msra.mxu0 0.0
  %651 = vmatprep.subr.mxu0 0.0
  %652 = vmatpush1.msra.mxu0 0.0
  %653 = vmatprep.subr.mxu0 0.0
  %654 = vmatpush1.msra.mxu0 0.0
  %655 = vmatprep.subr.mxu0 0.0
  %656 = vmatpush1.msra.mxu0 0.0
  %657 = vmatprep.subr.mxu0 0.0
  %658 = vmatpush1.msra.mxu0 0.0
  %659 = vmatprep.subr.mxu0 0.0
  %660 = vmatpush1.msra.mxu0 0.0
  %661 = vmatprep.subr.mxu0 0.0
  %662 = vmatpush1.msra.mxu0 0.0
  %663 = vmatprep.subr.mxu0 0.0
  %664 = vmatpush1.msra.mxu0 0.0
  %665 = vmatprep.subr.mxu0 0.0
  %666 = vmatpush1.msra.mxu0 0.0
  %667 = vmatprep.subr.mxu0 0.0
  %668 = vmatpush1.msra.mxu0 0.0
  %669 = vmatprep.subr.mxu0 0.0
  %670 = vmatpush1.msra.mxu0 0.0
  %671 = vmatprep.subr.mxu0 0.0
  %672 = vmatpush1.msra.mxu0 0.0
  %673 = vmatprep.subr.mxu0 0.0
  %674 = vmatpush1.msra.mxu0 0.0
  %675 = vmatprep.subr.mxu0 0.0
  %676 = vmatpush1.msra.mxu0 0.0
  %677 = vmatprep.subr.mxu0 0.0
  %678 = vmatpush1.msra.mxu0 0.0
  %679 = vmatprep.subr.mxu0 0.0
  %680 = vmatpush1.msra.mxu0 0.0
  %681 = vmatprep.subr.mxu0 0.0
  %682 = vmatpush1.msra.mxu0 0.0
  %683 = vmatprep.subr.mxu0 0.0
  %684 = vmatpush1.msra.mxu0 0.0
  %685 = vmatprep.subr.mxu0 0.0
  %686 = vmatpush1.msra.mxu0 0.0
  %687 = vmatprep.subr.mxu0 0.0
  %688 = vmatpush1.msra.mxu0 0.0
  %689 = vmatprep.subr.mxu0 0.0
  %690 = vmatpush1.msra.mxu0 0.0
  %691 = vmatprep.subr.mxu0 0.0
  %692 = vmatpush1.msra.mxu0 0.0
  %693 = vmatprep.mubr.f32.mxu0 0.0
  %v694 = vand.u32 %v117, 4294901760
  %695 = vmatmul.mubr.f32.gmra.mrb[0].mxu0 %v694
  %v696 = vpop.f32.mrb[0].mxu0
  %v697 = vadd.f32 %v615, %v696
  %v698 = vpop.f32.mrb[0].mxu0
  %v699 = vadd.f32 %v617, %v698
  %700 = vdwg.mxu0
  %v701 = vand.u32 %v97, 4294901760
  %702 = vmatprep.subr.mxu0 %v701
  %v703 = vand.u32 %v96, 4294901760
  %704 = vmatpush1.msra.mxu0 %v703
  %v705 = vand.u32 %v101, 4294901760
  %706 = vmatprep.subr.mxu0 %v705
  %v707 = vand.u32 %v100, 4294901760
  %708 = vmatpush1.msra.mxu0 %v707
  %v709 = vand.u32 %v105, 4294901760
  %710 = vmatprep.subr.mxu0 %v709
  %v711 = vand.u32 %v104, 4294901760
  %712 = vmatpush1.msra.mxu0 %v711
  %v713 = vand.u32 %v109, 4294901760
  %714 = vmatprep.subr.mxu0 %v713
  %v715 = vand.u32 %v108, 4294901760
  %716 = vmatpush1.msra.mxu0 %v715
  %v717 = vand.u32 %v130, 4294901760
  %718 = vmatprep.subr.mxu0 %v717
  %v719 = vand.u32 %v127, 4294901760
  %720 = vmatpush1.msra.mxu0 %v719
  %721 = vmatprep.subr.mxu0 0.0
  %722 = vmatpush1.msra.mxu0 0.0
  %723 = vmatprep.subr.mxu0 0.0
  %724 = vmatpush1.msra.mxu0 0.0
  %725 = vmatprep.subr.mxu0 0.0
  %726 = vmatpush1.msra.mxu0 0.0
  %727 = vmatprep.subr.mxu0 0.0
  %728 = vmatpush1.msra.mxu0 0.0
  %729 = vmatprep.subr.mxu0 0.0
  %730 = vmatpush1.msra.mxu0 0.0
  %731 = vmatprep.subr.mxu0 0.0
  %732 = vmatpush1.msra.mxu0 0.0
  %733 = vmatprep.subr.mxu0 0.0
  %734 = vmatpush1.msra.mxu0 0.0
  %735 = vmatprep.subr.mxu0 0.0
  %736 = vmatpush1.msra.mxu0 0.0
  %737 = vmatprep.subr.mxu0 0.0
  %738 = vmatpush1.msra.mxu0 0.0
  %739 = vmatprep.subr.mxu0 0.0
  %740 = vmatpush1.msra.mxu0 0.0
  %741 = vmatprep.subr.mxu0 0.0
  %742 = vmatpush1.msra.mxu0 0.0
  %743 = vmatprep.subr.mxu0 0.0
  %744 = vmatpush1.msra.mxu0 0.0
  %745 = vmatprep.subr.mxu0 0.0
  %746 = vmatpush1.msra.mxu0 0.0
  %747 = vmatprep.subr.mxu0 0.0
  %748 = vmatpush1.msra.mxu0 0.0
  %749 = vmatprep.subr.mxu0 0.0
  %750 = vmatpush1.msra.mxu0 0.0
  %751 = vmatprep.subr.mxu0 0.0
  %752 = vmatpush1.msra.mxu0 0.0
  %753 = vmatprep.subr.mxu0 0.0
  %754 = vmatpush1.msra.mxu0 0.0
  %755 = vmatprep.subr.mxu0 0.0
  %756 = vmatpush1.msra.mxu0 0.0
  %757 = vmatprep.subr.mxu0 0.0
  %758 = vmatpush1.msra.mxu0 0.0
  %759 = vmatprep.subr.mxu0 0.0
  %760 = vmatpush1.msra.mxu0 0.0
  %761 = vmatprep.subr.mxu0 0.0
  %762 = vmatpush1.msra.mxu0 0.0
  %763 = vmatprep.subr.mxu0 0.0
  %764 = vmatpush1.msra.mxu0 0.0
  %765 = vmatprep.subr.mxu0 0.0
  %766 = vmatpush1.msra.mxu0 0.0
  %767 = vmatprep.subr.mxu0 0.0
  %768 = vmatpush1.msra.mxu0 0.0
  %769 = vmatprep.subr.mxu0 0.0
  %770 = vmatpush1.msra.mxu0 0.0
  %771 = vmatprep.subr.mxu0 0.0
  %772 = vmatpush1.msra.mxu0 0.0
  %773 = vmatprep.subr.mxu0 0.0
  %774 = vmatpush1.msra.mxu0 0.0
  %775 = vmatprep.mubr.f32.mxu0 0.0
  %v776 = vand.u32 %v117, 4294901760
  %v777 = vsub.f32 %v117, %v776
  %v778 = vand.u32 %v777, 4294901760
  %v779 = vsub.f32 %v777, %v778
  %v780 = vand.u32 %v779, 4294901760
  %781 = vmatmul.mubr.f32.gmra.mrb[0].mxu0 %v780
  %v782 = vpop.f32.mrb[0].mxu0
  %v783 = vadd.f32 0.0, %v782
  %v784 = vpop.f32.mrb[0].mxu0
  %v785 = vadd.f32 0.0, %v784
  %786 = vdwg.mxu0
  %v787 = vand.u32 %v97, 4294901760
  %v788 = vsub.f32 %v97, %v787
  %v789 = vand.u32 %v788, 4294901760
  %v790 = vsub.f32 %v788, %v789
  %v791 = vand.u32 %v790, 4294901760
  %792 = vmatprep.subr.mxu0 %v791
  %v793 = vand.u32 %v96, 4294901760
  %v794 = vsub.f32 %v96, %v793
  %v795 = vand.u32 %v794, 4294901760
  %v796 = vsub.f32 %v794, %v795
  %v797 = vand.u32 %v796, 4294901760
  %798 = vmatpush1.msra.mxu0 %v797
  %v799 = vand.u32 %v101, 4294901760
  %v800 = vsub.f32 %v101, %v799
  %v801 = vand.u32 %v800, 4294901760
  %v802 = vsub.f32 %v800, %v801
  %v803 = vand.u32 %v802, 4294901760
  %804 = vmatprep.subr.mxu0 %v803
  %v805 = vand.u32 %v100, 4294901760
  %v806 = vsub.f32 %v100, %v805
  %v807 = vand.u32 %v806, 4294901760
  %v808 = vsub.f32 %v806, %v807
  %v809 = vand.u32 %v808, 4294901760
  %810 = vmatpush1.msra.mxu0 %v809
  %v811 = vand.u32 %v105, 4294901760
  %v812 = vsub.f32 %v105, %v811
  %v813 = vand.u32 %v812, 4294901760
  %v814 = vsub.f32 %v812, %v813
  %v815 = vand.u32 %v814, 4294901760
  %816 = vmatprep.subr.mxu0 %v815
  %v817 = vand.u32 %v104, 4294901760
  %v818 = vsub.f32 %v104, %v817
  %v819 = vand.u32 %v818, 4294901760
  %v820 = vsub.f32 %v818, %v819
  %v821 = vand.u32 %v820, 4294901760
  %822 = vmatpush1.msra.mxu0 %v821
  %v823 = vand.u32 %v109, 4294901760
  %v824 = vsub.f32 %v109, %v823
  %v825 = vand.u32 %v824, 4294901760
  %v826 = vsub.f32 %v824, %v825
  %v827 = vand.u32 %v826, 4294901760
  %828 = vmatprep.subr.mxu0 %v827
  %v829 = vand.u32 %v108, 4294901760
  %v830 = vsub.f32 %v108, %v829
  %v831 = vand.u32 %v830, 4294901760
  %v832 = vsub.f32 %v830, %v831
  %v833 = vand.u32 %v832, 4294901760
  %834 = vmatpush1.msra.mxu0 %v833
  %v835 = vand.u32 %v130, 4294901760
  %v836 = vsub.f32 %v130, %v835
  %v837 = vand.u32 %v836, 4294901760
  %v838 = vsub.f32 %v836, %v837
  %v839 = vand.u32 %v838, 4294901760
  %840 = vmatprep.subr.mxu0 %v839
  %v841 = vand.u32 %v127, 4294901760
  %v842 = vsub.f32 %v127, %v841
  %v843 = vand.u32 %v842, 4294901760
  %v844 = vsub.f32 %v842, %v843
  %v845 = vand.u32 %v844, 4294901760
  %846 = vmatpush1.msra.mxu0 %v845
  %847 = vmatprep.subr.mxu0 0.0
  %848 = vmatpush1.msra.mxu0 0.0
  %849 = vmatprep.subr.mxu0 0.0
  %850 = vmatpush1.msra.mxu0 0.0
  %851 = vmatprep.subr.mxu0 0.0
  %852 = vmatpush1.msra.mxu0 0.0
  %853 = vmatprep.subr.mxu0 0.0
  %854 = vmatpush1.msra.mxu0 0.0
  %855 = vmatprep.subr.mxu0 0.0
  %856 = vmatpush1.msra.mxu0 0.0
  %857 = vmatprep.subr.mxu0 0.0
  %858 = vmatpush1.msra.mxu0 0.0
  %859 = vmatprep.subr.mxu0 0.0
  %860 = vmatpush1.msra.mxu0 0.0
  %861 = vmatprep.subr.mxu0 0.0
  %862 = vmatpush1.msra.mxu0 0.0
  %863 = vmatprep.subr.mxu0 0.0
  %864 = vmatpush1.msra.mxu0 0.0
  %865 = vmatprep.subr.mxu0 0.0
  %866 = vmatpush1.msra.mxu0 0.0
  %867 = vmatprep.subr.mxu0 0.0
  %868 = vmatpush1.msra.mxu0 0.0
  %869 = vmatprep.subr.mxu0 0.0
  %870 = vmatpush1.msra.mxu0 0.0
  %871 = vmatprep.subr.mxu0 0.0
  %872 = vmatpush1.msra.mxu0 0.0
  %873 = vmatprep.subr.mxu0 0.0
  %874 = vmatpush1.msra.mxu0 0.0
  %875 = vmatprep.subr.mxu0 0.0
  %876 = vmatpush1.msra.mxu0 0.0
  %877 = vmatprep.subr.mxu0 0.0
  %878 = vmatpush1.msra.mxu0 0.0
  %879 = vmatprep.subr.mxu0 0.0
  %880 = vmatpush1.msra.mxu0 0.0
  %881 = vmatprep.subr.mxu0 0.0
  %882 = vmatpush1.msra.mxu0 0.0
  %883 = vmatprep.subr.mxu0 0.0
  %884 = vmatpush1.msra.mxu0 0.0
  %885 = vmatprep.subr.mxu0 0.0
  %886 = vmatpush1.msra.mxu0 0.0
  %887 = vmatprep.subr.mxu0 0.0
  %888 = vmatpush1.msra.mxu0 0.0
  %889 = vmatprep.subr.mxu0 0.0
  %890 = vmatpush1.msra.mxu0 0.0
  %891 = vmatprep.subr.mxu0 0.0
  %892 = vmatpush1.msra.mxu0 0.0
  %893 = vmatprep.subr.mxu0 0.0
  %894 = vmatpush1.msra.mxu0 0.0
  %895 = vmatprep.subr.mxu0 0.0
  %896 = vmatpush1.msra.mxu0 0.0
  %897 = vmatprep.subr.mxu0 0.0
  %898 = vmatpush1.msra.mxu0 0.0
  %899 = vmatprep.subr.mxu0 0.0
  %900 = vmatpush1.msra.mxu0 0.0
  %901 = vmatprep.mubr.f32.mxu0 0.0
  %v902 = vand.u32 %v117, 4294901760
  %903 = vmatmul.mubr.f32.gmra.mrb[0].mxu0 %v902
  %v904 = vpop.f32.mrb[0].mxu0
  %v905 = vadd.f32 %v783, %v904
  %v906 = vpop.f32.mrb[0].mxu0
  %v907 = vadd.f32 %v785, %v906
  %908 = vdwg.mxu0
  %v909 = vand.u32 %v97, 4294901760
  %v910 = vsub.f32 %v97, %v909
  %911 = vmatprep.subr.mxu0 %v910
  %v912 = vand.u32 %v96, 4294901760
  %v913 = vsub.f32 %v96, %v912
  %914 = vmatpush1.msra.mxu0 %v913
  %v915 = vand.u32 %v101, 4294901760
  %v916 = vsub.f32 %v101, %v915
  %917 = vmatprep.subr.mxu0 %v916
  %v918 = vand.u32 %v100, 4294901760
  %v919 = vsub.f32 %v100, %v918
  %920 = vmatpush1.msra.mxu0 %v919
  %v921 = vand.u32 %v105, 4294901760
  %v922 = vsub.f32 %v105, %v921
  %923 = vmatprep.subr.mxu0 %v922
  %v924 = vand.u32 %v104, 4294901760
  %v925 = vsub.f32 %v104, %v924
  %926 = vmatpush1.msra.mxu0 %v925
  %v927 = vand.u32 %v109, 4294901760
  %v928 = vsub.f32 %v109, %v927
  %929 = vmatprep.subr.mxu0 %v928
  %v930 = vand.u32 %v108, 4294901760
  %v931 = vsub.f32 %v108, %v930
  %932 = vmatpush1.msra.mxu0 %v931
  %v933 = vand.u32 %v130, 4294901760
  %v934 = vsub.f32 %v130, %v933
  %935 = vmatprep.subr.mxu0 %v934
  %v936 = vand.u32 %v127, 4294901760
  %v937 = vsub.f32 %v127, %v936
  %938 = vmatpush1.msra.mxu0 %v937
  %939 = vmatprep.subr.mxu0 0.0
  %940 = vmatpush1.msra.mxu0 0.0
  %941 = vmatprep.subr.mxu0 0.0
  %942 = vmatpush1.msra.mxu0 0.0
  %943 = vmatprep.subr.mxu0 0.0
  %944 = vmatpush1.msra.mxu0 0.0
  %945 = vmatprep.subr.mxu0 0.0
  %946 = vmatpush1.msra.mxu0 0.0
  %947 = vmatprep.subr.mxu0 0.0
  %948 = vmatpush1.msra.mxu0 0.0
  %949 = vmatprep.subr.mxu0 0.0
  %950 = vmatpush1.msra.mxu0 0.0
  %951 = vmatprep.subr.mxu0 0.0
  %952 = vmatpush1.msra.mxu0 0.0
  %953 = vmatprep.subr.mxu0 0.0
  %954 = vmatpush1.msra.mxu0 0.0
  %955 = vmatprep.subr.mxu0 0.0
  %956 = vmatpush1.msra.mxu0 0.0
  %957 = vmatprep.subr.mxu0 0.0
  %958 = vmatpush1.msra.mxu0 0.0
  %959 = vmatprep.subr.mxu0 0.0
  %960 = vmatpush1.msra.mxu0 0.0
  %961 = vmatprep.subr.mxu0 0.0
  %962 = vmatpush1.msra.mxu0 0.0
  %963 = vmatprep.subr.mxu0 0.0
  %964 = vmatpush1.msra.mxu0 0.0
  %965 = vmatprep.subr.mxu0 0.0
  %966 = vmatpush1.msra.mxu0 0.0
  %967 = vmatprep.subr.mxu0 0.0
  %968 = vmatpush1.msra.mxu0 0.0
  %969 = vmatprep.subr.mxu0 0.0
  %970 = vmatpush1.msra.mxu0 0.0
  %971 = vmatprep.subr.mxu0 0.0
  %972 = vmatpush1.msra.mxu0 0.0
  %973 = vmatprep.subr.mxu0 0.0
  %974 = vmatpush1.msra.mxu0 0.0
  %975 = vmatprep.subr.mxu0 0.0
  %976 = vmatpush1.msra.mxu0 0.0
  %977 = vmatprep.subr.mxu0 0.0
  %978 = vmatpush1.msra.mxu0 0.0
  %979 = vmatprep.subr.mxu0 0.0
  %980 = vmatpush1.msra.mxu0 0.0
  %981 = vmatprep.subr.mxu0 0.0
  %982 = vmatpush1.msra.mxu0 0.0
  %983 = vmatprep.subr.mxu0 0.0
  %984 = vmatpush1.msra.mxu0 0.0
  %985 = vmatprep.subr.mxu0 0.0
  %986 = vmatpush1.msra.mxu0 0.0
  %987 = vmatprep.subr.mxu0 0.0
  %988 = vmatpush1.msra.mxu0 0.0
  %989 = vmatprep.subr.mxu0 0.0
  %990 = vmatpush1.msra.mxu0 0.0
  %991 = vmatprep.subr.mxu0 0.0
  %992 = vmatpush1.msra.mxu0 0.0
  %993 = vmatprep.mubr.f32.mxu0 0.0
  %v994 = vand.u32 %v117, 4294901760
  %v995 = vsub.f32 %v117, %v994
  %996 = vmatmul.mubr.f32.gmra.mrb[0].mxu0 %v995
  %v997 = vpop.f32.mrb[0].mxu0
  %v998 = vadd.f32 %v905, %v997
  %v999 = vpop.f32.mrb[0].mxu0
  %v1000 = vadd.f32 %v907, %v999
  %1001 = vdwg.mxu0
  %v1002 = vand.u32 %v97, 4294901760
  %1003 = vmatprep.subr.mxu0 %v1002
  %v1004 = vand.u32 %v96, 4294901760
  %1005 = vmatpush1.msra.mxu0 %v1004
  %v1006 = vand.u32 %v101, 4294901760
  %1007 = vmatprep.subr.mxu0 %v1006
  %v1008 = vand.u32 %v100, 4294901760
  %1009 = vmatpush1.msra.mxu0 %v1008
  %v1010 = vand.u32 %v105, 4294901760
  %1011 = vmatprep.subr.mxu0 %v1010
  %v1012 = vand.u32 %v104, 4294901760
  %1013 = vmatpush1.msra.mxu0 %v1012
  %v1014 = vand.u32 %v109, 4294901760
  %1015 = vmatprep.subr.mxu0 %v1014
  %v1016 = vand.u32 %v108, 4294901760
  %1017 = vmatpush1.msra.mxu0 %v1016
  %v1018 = vand.u32 %v130, 4294901760
  %1019 = vmatprep.subr.mxu0 %v1018
  %v1020 = vand.u32 %v127, 4294901760
  %1021 = vmatpush1.msra.mxu0 %v1020
  %1022 = vmatprep.subr.mxu0 0.0
  %1023 = vmatpush1.msra.mxu0 0.0
  %1024 = vmatprep.subr.mxu0 0.0
  %1025 = vmatpush1.msra.mxu0 0.0
  %1026 = vmatprep.subr.mxu0 0.0
  %1027 = vmatpush1.msra.mxu0 0.0
  %1028 = vmatprep.subr.mxu0 0.0
  %1029 = vmatpush1.msra.mxu0 0.0
  %1030 = vmatprep.subr.mxu0 0.0
  %1031 = vmatpush1.msra.mxu0 0.0
  %1032 = vmatprep.subr.mxu0 0.0
  %1033 = vmatpush1.msra.mxu0 0.0
  %1034 = vmatprep.subr.mxu0 0.0
  %1035 = vmatpush1.msra.mxu0 0.0
  %1036 = vmatprep.subr.mxu0 0.0
  %1037 = vmatpush1.msra.mxu0 0.0
  %1038 = vmatprep.subr.mxu0 0.0
  %1039 = vmatpush1.msra.mxu0 0.0
  %1040 = vmatprep.subr.mxu0 0.0
  %1041 = vmatpush1.msra.mxu0 0.0
  %1042 = vmatprep.subr.mxu0 0.0
  %1043 = vmatpush1.msra.mxu0 0.0
  %1044 = vmatprep.subr.mxu0 0.0
  %1045 = vmatpush1.msra.mxu0 0.0
  %1046 = vmatprep.subr.mxu0 0.0
  %1047 = vmatpush1.msra.mxu0 0.0
  %1048 = vmatprep.subr.mxu0 0.0
  %1049 = vmatpush1.msra.mxu0 0.0
  %1050 = vmatprep.subr.mxu0 0.0
  %1051 = vmatpush1.msra.mxu0 0.0
  %1052 = vmatprep.subr.mxu0 0.0
  %1053 = vmatpush1.msra.mxu0 0.0
  %1054 = vmatprep.subr.mxu0 0.0
  %1055 = vmatpush1.msra.mxu0 0.0
  %1056 = vmatprep.subr.mxu0 0.0
  %1057 = vmatpush1.msra.mxu0 0.0
  %1058 = vmatprep.subr.mxu0 0.0
  %1059 = vmatpush1.msra.mxu0 0.0
  %1060 = vmatprep.subr.mxu0 0.0
  %1061 = vmatpush1.msra.mxu0 0.0
  %1062 = vmatprep.subr.mxu0 0.0
  %1063 = vmatpush1.msra.mxu0 0.0
  %1064 = vmatprep.subr.mxu0 0.0
  %1065 = vmatpush1.msra.mxu0 0.0
  %1066 = vmatprep.subr.mxu0 0.0
  %1067 = vmatpush1.msra.mxu0 0.0
  %1068 = vmatprep.subr.mxu0 0.0
  %1069 = vmatpush1.msra.mxu0 0.0
  %1070 = vmatprep.subr.mxu0 0.0
  %1071 = vmatpush1.msra.mxu0 0.0
  %1072 = vmatprep.subr.mxu0 0.0
  %1073 = vmatpush1.msra.mxu0 0.0
  %1074 = vmatprep.subr.mxu0 0.0
  %1075 = vmatpush1.msra.mxu0 0.0
  %1076 = vmatprep.mubr.f32.mxu0 0.0
  %v1077 = vand.u32 %v117, 4294901760
  %v1078 = vsub.f32 %v117, %v1077
  %v1079 = vand.u32 %v1078, 4294901760
  %1080 = vmatmul.mubr.f32.gmra.mrb[0].mxu0 %v1079
  %v1081 = vpop.f32.mrb[0].mxu0
  %v1082 = vadd.f32 %v998, %v1081
  %v1083 = vpop.f32.mrb[0].mxu0
  %v1084 = vadd.f32 %v1000, %v1083
  %1085 = vdwg.mxu0
  %v1086 = vand.u32 %v97, 4294901760
  %v1087 = vsub.f32 %v97, %v1086
  %v1088 = vand.u32 %v1087, 4294901760
  %1089 = vmatprep.subr.mxu0 %v1088
  %v1090 = vand.u32 %v96, 4294901760
  %v1091 = vsub.f32 %v96, %v1090
  %v1092 = vand.u32 %v1091, 4294901760
  %1093 = vmatpush1.msra.mxu0 %v1092
  %v1094 = vand.u32 %v101, 4294901760
  %v1095 = vsub.f32 %v101, %v1094
  %v1096 = vand.u32 %v1095, 4294901760
  %1097 = vmatprep.subr.mxu0 %v1096
  %v1098 = vand.u32 %v100, 4294901760
  %v1099 = vsub.f32 %v100, %v1098
  %v1100 = vand.u32 %v1099, 4294901760
  %1101 = vmatpush1.msra.mxu0 %v1100
  %v1102 = vand.u32 %v105, 4294901760
  %v1103 = vsub.f32 %v105, %v1102
  %v1104 = vand.u32 %v1103, 4294901760
  %1105 = vmatprep.subr.mxu0 %v1104
  %v1106 = vand.u32 %v104, 4294901760
  %v1107 = vsub.f32 %v104, %v1106
  %v1108 = vand.u32 %v1107, 4294901760
  %1109 = vmatpush1.msra.mxu0 %v1108
  %v1110 = vand.u32 %v109, 4294901760
  %v1111 = vsub.f32 %v109, %v1110
  %v1112 = vand.u32 %v1111, 4294901760
  %1113 = vmatprep.subr.mxu0 %v1112
  %v1114 = vand.u32 %v108, 4294901760
  %v1115 = vsub.f32 %v108, %v1114
  %v1116 = vand.u32 %v1115, 4294901760
  %1117 = vmatpush1.msra.mxu0 %v1116
  %v1118 = vand.u32 %v130, 4294901760
  %v1119 = vsub.f32 %v130, %v1118
  %v1120 = vand.u32 %v1119, 4294901760
  %1121 = vmatprep.subr.mxu0 %v1120
  %v1122 = vand.u32 %v127, 4294901760
  %v1123 = vsub.f32 %v127, %v1122
  %v1124 = vand.u32 %v1123, 4294901760
  %1125 = vmatpush1.msra.mxu0 %v1124
  %1126 = vmatprep.subr.mxu0 0.0
  %1127 = vmatpush1.msra.mxu0 0.0
  %1128 = vmatprep.subr.mxu0 0.0
  %1129 = vmatpush1.msra.mxu0 0.0
  %1130 = vmatprep.subr.mxu0 0.0
  %1131 = vmatpush1.msra.mxu0 0.0
  %1132 = vmatprep.subr.mxu0 0.0
  %1133 = vmatpush1.msra.mxu0 0.0
  %1134 = vmatprep.subr.mxu0 0.0
  %1135 = vmatpush1.msra.mxu0 0.0
  %1136 = vmatprep.subr.mxu0 0.0
  %1137 = vmatpush1.msra.mxu0 0.0
  %1138 = vmatprep.subr.mxu0 0.0
  %1139 = vmatpush1.msra.mxu0 0.0
  %1140 = vmatprep.subr.mxu0 0.0
  %1141 = vmatpush1.msra.mxu0 0.0
  %1142 = vmatprep.subr.mxu0 0.0
  %1143 = vmatpush1.msra.mxu0 0.0
  %1144 = vmatprep.subr.mxu0 0.0
  %1145 = vmatpush1.msra.mxu0 0.0
  %1146 = vmatprep.subr.mxu0 0.0
  %1147 = vmatpush1.msra.mxu0 0.0
  %1148 = vmatprep.subr.mxu0 0.0
  %1149 = vmatpush1.msra.mxu0 0.0
  %1150 = vmatprep.subr.mxu0 0.0
  %1151 = vmatpush1.msra.mxu0 0.0
  %1152 = vmatprep.subr.mxu0 0.0
  %1153 = vmatpush1.msra.mxu0 0.0
  %1154 = vmatprep.subr.mxu0 0.0
  %1155 = vmatpush1.msra.mxu0 0.0
  %1156 = vmatprep.subr.mxu0 0.0
  %1157 = vmatpush1.msra.mxu0 0.0
  %1158 = vmatprep.subr.mxu0 0.0
  %1159 = vmatpush1.msra.mxu0 0.0
  %1160 = vmatprep.subr.mxu0 0.0
  %1161 = vmatpush1.msra.mxu0 0.0
  %1162 = vmatprep.subr.mxu0 0.0
  %1163 = vmatpush1.msra.mxu0 0.0
  %1164 = vmatprep.subr.mxu0 0.0
  %1165 = vmatpush1.msra.mxu0 0.0
  %1166 = vmatprep.subr.mxu0 0.0
  %1167 = vmatpush1.msra.mxu0 0.0
  %1168 = vmatprep.subr.mxu0 0.0
  %1169 = vmatpush1.msra.mxu0 0.0
  %1170 = vmatprep.subr.mxu0 0.0
  %1171 = vmatpush1.msra.mxu0 0.0
  %1172 = vmatprep.subr.mxu0 0.0
  %1173 = vmatpush1.msra.mxu0 0.0
  %1174 = vmatprep.subr.mxu0 0.0
  %1175 = vmatpush1.msra.mxu0 0.0
  %1176 = vmatprep.subr.mxu0 0.0
  %1177 = vmatpush1.msra.mxu0 0.0
  %1178 = vmatprep.subr.mxu0 0.0
  %1179 = vmatpush1.msra.mxu0 0.0
  %1180 = vmatprep.mubr.f32.mxu0 0.0
  %v1181 = vand.u32 %v117, 4294901760
  %1182 = vmatmul.mubr.f32.gmra.mrb[0].mxu0 %v1181
  %v1183 = vpop.f32.mrb[0].mxu0
  %v1184 = vadd.f32 %v1082, %v1183
  %v1185 = vpop.f32.mrb[0].mxu0
  %v1186 = vadd.f32 %v1084, %v1185
  %1187 = vdwg.mxu0
  %v1188 = vand.u32 %v97, 4294901760
  %1189 = vmatprep.subr.mxu0 %v1188
  %v1190 = vand.u32 %v96, 4294901760
  %1191 = vmatpush1.msra.mxu0 %v1190
  %v1192 = vand.u32 %v101, 4294901760
  %1193 = vmatprep.subr.mxu0 %v1192
  %v1194 = vand.u32 %v100, 4294901760
  %1195 = vmatpush1.msra.mxu0 %v1194
  %v1196 = vand.u32 %v105, 4294901760
  %1197 = vmatprep.subr.mxu0 %v1196
  %v1198 = vand.u32 %v104, 4294901760
  %1199 = vmatpush1.msra.mxu0 %v1198
  %v1200 = vand.u32 %v109, 4294901760
  %1201 = vmatprep.subr.mxu0 %v1200
  %v1202 = vand.u32 %v108, 4294901760
  %1203 = vmatpush1.msra.mxu0 %v1202
  %v1204 = vand.u32 %v130, 4294901760
  %1205 = vmatprep.subr.mxu0 %v1204
  %v1206 = vand.u32 %v127, 4294901760
  %1207 = vmatpush1.msra.mxu0 %v1206
  %1208 = vmatprep.subr.mxu0 0.0
  %1209 = vmatpush1.msra.mxu0 0.0
  %1210 = vmatprep.subr.mxu0 0.0
  %1211 = vmatpush1.msra.mxu0 0.0
  %1212 = vmatprep.subr.mxu0 0.0
  %1213 = vmatpush1.msra.mxu0 0.0
  %1214 = vmatprep.subr.mxu0 0.0
  %1215 = vmatpush1.msra.mxu0 0.0
  %1216 = vmatprep.subr.mxu0 0.0
  %1217 = vmatpush1.msra.mxu0 0.0
  %1218 = vmatprep.subr.mxu0 0.0
  %1219 = vmatpush1.msra.mxu0 0.0
  %1220 = vmatprep.subr.mxu0 0.0
  %1221 = vmatpush1.msra.mxu0 0.0
  %1222 = vmatprep.subr.mxu0 0.0
  %1223 = vmatpush1.msra.mxu0 0.0
  %1224 = vmatprep.subr.mxu0 0.0
  %1225 = vmatpush1.msra.mxu0 0.0
  %1226 = vmatprep.subr.mxu0 0.0
  %1227 = vmatpush1.msra.mxu0 0.0
  %1228 = vmatprep.subr.mxu0 0.0
  %1229 = vmatpush1.msra.mxu0 0.0
  %1230 = vmatprep.subr.mxu0 0.0
  %1231 = vmatpush1.msra.mxu0 0.0
  %1232 = vmatprep.subr.mxu0 0.0
  %1233 = vmatpush1.msra.mxu0 0.0
  %1234 = vmatprep.subr.mxu0 0.0
  %1235 = vmatpush1.msra.mxu0 0.0
  %1236 = vmatprep.subr.mxu0 0.0
  %1237 = vmatpush1.msra.mxu0 0.0
  %1238 = vmatprep.subr.mxu0 0.0
  %1239 = vmatpush1.msra.mxu0 0.0
  %1240 = vmatprep.subr.mxu0 0.0
  %1241 = vmatpush1.msra.mxu0 0.0
  %1242 = vmatprep.subr.mxu0 0.0
  %1243 = vmatpush1.msra.mxu0 0.0
  %1244 = vmatprep.subr.mxu0 0.0
  %1245 = vmatpush1.msra.mxu0 0.0
  %1246 = vmatprep.subr.mxu0 0.0
  %1247 = vmatpush1.msra.mxu0 0.0
  %1248 = vmatprep.subr.mxu0 0.0
  %1249 = vmatpush1.msra.mxu0 0.0
  %1250 = vmatprep.subr.mxu0 0.0
  %1251 = vmatpush1.msra.mxu0 0.0
  %1252 = vmatprep.subr.mxu0 0.0
  %1253 = vmatpush1.msra.mxu0 0.0
  %1254 = vmatprep.subr.mxu0 0.0
  %1255 = vmatpush1.msra.mxu0 0.0
  %1256 = vmatprep.subr.mxu0 0.0
  %1257 = vmatpush1.msra.mxu0 0.0
  %1258 = vmatprep.subr.mxu0 0.0
  %1259 = vmatpush1.msra.mxu0 0.0
  %1260 = vmatprep.subr.mxu0 0.0
  %1261 = vmatpush1.msra.mxu0 0.0
  %1262 = vmatprep.mubr.f32.mxu0 0.0
  %v1263 = vand.u32 %v117, 4294901760
  %1264 = vmatmul.mubr.f32.gmra.mrb[0].mxu0 %v1263
  %v1265 = vpop.f32.mrb[0].mxu0
  %v1266 = vadd.f32 %v1184, %v1265
  %v1267 = vpop.f32.mrb[0].mxu0
  %v1268 = vadd.f32 %v1186, %v1267
  %1269 = vdwg.mxu0
  %v1270 = vmul.f32 %v697, 65536.0
  %v1271 = vmul.f32 %v699, 65536.0
  %v1272 = vmul.f32 %v1266, 65536.0
  %v1273 = vmul.f32 %v1268, 65536.0
  %v1274 = vround.ne.pseudo %v1270
  %v1275 = vround.ne.pseudo %v1271
  %v1276 = vround.ne.pseudo %v1272
  %v1277 = vround.ne.pseudo %v1273
  %v1278 = vmul.f32 %v1274, 1.5258789e-05
  %v1279 = vmul.f32 %v1275, 1.5258789e-05
  %v1280 = vmul.f32 %v1276, 1.5258789e-05
  %v1281 = vmul.f32 %v1277, 1.5258789e-05
  %v1282 = vld [vmem:[%s2] sm:$0xff]
  %vm1283 = vcmask 31744
  %v1285 = vsel %vm1283, %v1282, 0
  %v1288 = vsel %vm119, %v1278, 0
  %v1291 = vsel %vm119, %v1279, 0
  %v1294 = vsel %vm119, %v1280, 0
  %v1297 = vsel %vm119, %v1281, 0
  %v1299 = vand.u32 %v1291, 4294901760
  %1300 = vmatprep.subr.mxu0 %v1299
  %v1301 = vand.u32 %v1288, 4294901760
  %1302 = vmatpush1.msra.mxu0 %v1301
  %1303 = vmatprep.subr.mxu0 0.0
  %1304 = vmatpush1.msra.mxu0 0.0
  %1305 = vmatprep.subr.mxu0 0.0
  %1306 = vmatpush1.msra.mxu0 0.0
  %1307 = vmatprep.subr.mxu0 0.0
  %1308 = vmatpush1.msra.mxu0 0.0
  %1309 = vmatprep.subr.mxu0 0.0
  %1310 = vmatpush1.msra.mxu0 0.0
  %1311 = vmatprep.subr.mxu0 0.0
  %1312 = vmatpush1.msra.mxu0 0.0
  %1313 = vmatprep.subr.mxu0 0.0
  %1314 = vmatpush1.msra.mxu0 0.0
  %1315 = vmatprep.subr.mxu0 0.0
  %1316 = vmatpush1.msra.mxu0 0.0
  %1317 = vmatprep.subr.mxu0 0.0
  %1318 = vmatpush1.msra.mxu0 0.0
  %1319 = vmatprep.subr.mxu0 0.0
  %1320 = vmatpush1.msra.mxu0 0.0
  %1321 = vmatprep.subr.mxu0 0.0
  %1322 = vmatpush1.msra.mxu0 0.0
  %1323 = vmatprep.subr.mxu0 0.0
  %1324 = vmatpush1.msra.mxu0 0.0
  %1325 = vmatprep.subr.mxu0 0.0
  %1326 = vmatpush1.msra.mxu0 0.0
  %1327 = vmatprep.subr.mxu0 0.0
  %1328 = vmatpush1.msra.mxu0 0.0
  %1329 = vmatprep.subr.mxu0 0.0
  %1330 = vmatpush1.msra.mxu0 0.0
  %1331 = vmatprep.subr.mxu0 0.0
  %1332 = vmatpush1.msra.mxu0 0.0
  %1333 = vmatprep.subr.mxu0 0.0
  %1334 = vmatpush1.msra.mxu0 0.0
  %1335 = vmatprep.subr.mxu0 0.0
  %1336 = vmatpush1.msra.mxu0 0.0
  %1337 = vmatprep.subr.mxu0 0.0
  %1338 = vmatpush1.msra.mxu0 0.0
  %1339 = vmatprep.subr.mxu0 0.0
  %1340 = vmatpush1.msra.mxu0 0.0
  %1341 = vmatprep.subr.mxu0 0.0
  %1342 = vmatpush1.msra.mxu0 0.0
  %1343 = vmatprep.subr.mxu0 0.0
  %1344 = vmatpush1.msra.mxu0 0.0
  %1345 = vmatprep.subr.mxu0 0.0
  %1346 = vmatpush1.msra.mxu0 0.0
  %1347 = vmatprep.subr.mxu0 0.0
  %1348 = vmatpush1.msra.mxu0 0.0
  %1349 = vmatprep.subr.mxu0 0.0
  %1350 = vmatpush1.msra.mxu0 0.0
  %1351 = vmatprep.subr.mxu0 0.0
  %1352 = vmatpush1.msra.mxu0 0.0
  %1353 = vmatprep.subr.mxu0 0.0
  %1354 = vmatpush1.msra.mxu0 0.0
  %1355 = vmatprep.subr.mxu0 0.0
  %1356 = vmatpush1.msra.mxu0 0.0
  %1357 = vmatprep.subr.mxu0 0.0
  %1358 = vmatpush1.msra.mxu0 0.0
  %1359 = vmatprep.subr.mxu0 0.0
  %1360 = vmatpush1.msra.mxu0 0.0
  %1361 = vmatprep.subr.mxu0 0.0
  %1362 = vmatpush1.msra.mxu0 0.0
  %1363 = vmatprep.subr.mxu0 0.0
  %1364 = vmatpush1.msra.mxu0 0.0
  %1365 = vmatprep.mubr.f32.mxu0 0.0
  %v1366 = vand.u32 %v1285, 4294901760
  %v1367 = vsub.f32 %v1285, %v1366
  %v1368 = vand.u32 %v1367, 4294901760
  %v1369 = vsub.f32 %v1367, %v1368
  %v1370 = vand.u32 %v1369, 4294901760
  %1371 = vmatmul.mubr.f32.gmra.mrb[0].mxu0 %v1370
  %v1372 = vpop.f32.mrb[0].mxu0
  %v1373 = vadd.f32 0.0, %v1372
  %v1374 = vpop.f32.mrb[0].mxu0
  %v1375 = vadd.f32 0.0, %v1374
  %1376 = vdwg.mxu0
  %v1377 = vand.u32 %v1291, 4294901760
  %v1378 = vsub.f32 %v1291, %v1377
  %v1379 = vand.u32 %v1378, 4294901760
  %v1380 = vsub.f32 %v1378, %v1379
  %v1381 = vand.u32 %v1380, 4294901760
  %1382 = vmatprep.subr.mxu0 %v1381
  %v1383 = vand.u32 %v1288, 4294901760
  %v1384 = vsub.f32 %v1288, %v1383
  %v1385 = vand.u32 %v1384, 4294901760
  %v1386 = vsub.f32 %v1384, %v1385
  %v1387 = vand.u32 %v1386, 4294901760
  %1388 = vmatpush1.msra.mxu0 %v1387
  %1389 = vmatprep.subr.mxu0 0.0
  %1390 = vmatpush1.msra.mxu0 0.0
  %1391 = vmatprep.subr.mxu0 0.0
  %1392 = vmatpush1.msra.mxu0 0.0
  %1393 = vmatprep.subr.mxu0 0.0
  %1394 = vmatpush1.msra.mxu0 0.0
  %1395 = vmatprep.subr.mxu0 0.0
  %1396 = vmatpush1.msra.mxu0 0.0
  %1397 = vmatprep.subr.mxu0 0.0
  %1398 = vmatpush1.msra.mxu0 0.0
  %1399 = vmatprep.subr.mxu0 0.0
  %1400 = vmatpush1.msra.mxu0 0.0
  %1401 = vmatprep.subr.mxu0 0.0
  %1402 = vmatpush1.msra.mxu0 0.0
  %1403 = vmatprep.subr.mxu0 0.0
  %1404 = vmatpush1.msra.mxu0 0.0
  %1405 = vmatprep.subr.mxu0 0.0
  %1406 = vmatpush1.msra.mxu0 0.0
  %1407 = vmatprep.subr.mxu0 0.0
  %1408 = vmatpush1.msra.mxu0 0.0
  %1409 = vmatprep.subr.mxu0 0.0
  %1410 = vmatpush1.msra.mxu0 0.0
  %1411 = vmatprep.subr.mxu0 0.0
  %1412 = vmatpush1.msra.mxu0 0.0
  %1413 = vmatprep.subr.mxu0 0.0
  %1414 = vmatpush1.msra.mxu0 0.0
  %1415 = vmatprep.subr.mxu0 0.0
  %1416 = vmatpush1.msra.mxu0 0.0
  %1417 = vmatprep.subr.mxu0 0.0
  %1418 = vmatpush1.msra.mxu0 0.0
  %1419 = vmatprep.subr.mxu0 0.0
  %1420 = vmatpush1.msra.mxu0 0.0
  %1421 = vmatprep.subr.mxu0 0.0
  %1422 = vmatpush1.msra.mxu0 0.0
  %1423 = vmatprep.subr.mxu0 0.0
  %1424 = vmatpush1.msra.mxu0 0.0
  %1425 = vmatprep.subr.mxu0 0.0
  %1426 = vmatpush1.msra.mxu0 0.0
  %1427 = vmatprep.subr.mxu0 0.0
  %1428 = vmatpush1.msra.mxu0 0.0
  %1429 = vmatprep.subr.mxu0 0.0
  %1430 = vmatpush1.msra.mxu0 0.0
  %1431 = vmatprep.subr.mxu0 0.0
  %1432 = vmatpush1.msra.mxu0 0.0
  %1433 = vmatprep.subr.mxu0 0.0
  %1434 = vmatpush1.msra.mxu0 0.0
  %1435 = vmatprep.subr.mxu0 0.0
  %1436 = vmatpush1.msra.mxu0 0.0
  %1437 = vmatprep.subr.mxu0 0.0
  %1438 = vmatpush1.msra.mxu0 0.0
  %1439 = vmatprep.subr.mxu0 0.0
  %1440 = vmatpush1.msra.mxu0 0.0
  %1441 = vmatprep.subr.mxu0 0.0
  %1442 = vmatpush1.msra.mxu0 0.0
  %1443 = vmatprep.subr.mxu0 0.0
  %1444 = vmatpush1.msra.mxu0 0.0
  %1445 = vmatprep.subr.mxu0 0.0
  %1446 = vmatpush1.msra.mxu0 0.0
  %1447 = vmatprep.subr.mxu0 0.0
  %1448 = vmatpush1.msra.mxu0 0.0
  %1449 = vmatprep.subr.mxu0 0.0
  %1450 = vmatpush1.msra.mxu0 0.0
  %1451 = vmatprep.mubr.f32.mxu0 0.0
  %v1452 = vand.u32 %v1285, 4294901760
  %1453 = vmatmul.mubr.f32.gmra.mrb[0].mxu0 %v1452
  %v1454 = vpop.f32.mrb[0].mxu0
  %v1455 = vadd.f32 %v1373, %v1454
  %v1456 = vpop.f32.mrb[0].mxu0
  %v1457 = vadd.f32 %v1375, %v1456
  %1458 = vdwg.mxu0
  %v1459 = vand.u32 %v1291, 4294901760
  %v1460 = vsub.f32 %v1291, %v1459
  %1461 = vmatprep.subr.mxu0 %v1460
  %v1462 = vand.u32 %v1288, 4294901760
  %v1463 = vsub.f32 %v1288, %v1462
  %1464 = vmatpush1.msra.mxu0 %v1463
  %1465 = vmatprep.subr.mxu0 0.0
  %1466 = vmatpush1.msra.mxu0 0.0
  %1467 = vmatprep.subr.mxu0 0.0
  %1468 = vmatpush1.msra.mxu0 0.0
  %1469 = vmatprep.subr.mxu0 0.0
  %1470 = vmatpush1.msra.mxu0 0.0
  %1471 = vmatprep.subr.mxu0 0.0
  %1472 = vmatpush1.msra.mxu0 0.0
  %1473 = vmatprep.subr.mxu0 0.0
  %1474 = vmatpush1.msra.mxu0 0.0
  %1475 = vmatprep.subr.mxu0 0.0
  %1476 = vmatpush1.msra.mxu0 0.0
  %1477 = vmatprep.subr.mxu0 0.0
  %1478 = vmatpush1.msra.mxu0 0.0
  %1479 = vmatprep.subr.mxu0 0.0
  %1480 = vmatpush1.msra.mxu0 0.0
  %1481 = vmatprep.subr.mxu0 0.0
  %1482 = vmatpush1.msra.mxu0 0.0
  %1483 = vmatprep.subr.mxu0 0.0
  %1484 = vmatpush1.msra.mxu0 0.0
  %1485 = vmatprep.subr.mxu0 0.0
  %1486 = vmatpush1.msra.mxu0 0.0
  %1487 = vmatprep.subr.mxu0 0.0
  %1488 = vmatpush1.msra.mxu0 0.0
  %1489 = vmatprep.subr.mxu0 0.0
  %1490 = vmatpush1.msra.mxu0 0.0
  %1491 = vmatprep.subr.mxu0 0.0
  %1492 = vmatpush1.msra.mxu0 0.0
  %1493 = vmatprep.subr.mxu0 0.0
  %1494 = vmatpush1.msra.mxu0 0.0
  %1495 = vmatprep.subr.mxu0 0.0
  %1496 = vmatpush1.msra.mxu0 0.0
  %1497 = vmatprep.subr.mxu0 0.0
  %1498 = vmatpush1.msra.mxu0 0.0
  %1499 = vmatprep.subr.mxu0 0.0
  %1500 = vmatpush1.msra.mxu0 0.0
  %1501 = vmatprep.subr.mxu0 0.0
  %1502 = vmatpush1.msra.mxu0 0.0
  %1503 = vmatprep.subr.mxu0 0.0
  %1504 = vmatpush1.msra.mxu0 0.0
  %1505 = vmatprep.subr.mxu0 0.0
  %1506 = vmatpush1.msra.mxu0 0.0
  %1507 = vmatprep.subr.mxu0 0.0
  %1508 = vmatpush1.msra.mxu0 0.0
  %1509 = vmatprep.subr.mxu0 0.0
  %1510 = vmatpush1.msra.mxu0 0.0
  %1511 = vmatprep.subr.mxu0 0.0
  %1512 = vmatpush1.msra.mxu0 0.0
  %1513 = vmatprep.subr.mxu0 0.0
  %1514 = vmatpush1.msra.mxu0 0.0
  %1515 = vmatprep.subr.mxu0 0.0
  %1516 = vmatpush1.msra.mxu0 0.0
  %1517 = vmatprep.subr.mxu0 0.0
  %1518 = vmatpush1.msra.mxu0 0.0
  %1519 = vmatprep.subr.mxu0 0.0
  %1520 = vmatpush1.msra.mxu0 0.0
  %1521 = vmatprep.subr.mxu0 0.0
  %1522 = vmatpush1.msra.mxu0 0.0
  %1523 = vmatprep.subr.mxu0 0.0
  %1524 = vmatpush1.msra.mxu0 0.0
  %1525 = vmatprep.subr.mxu0 0.0
  %1526 = vmatpush1.msra.mxu0 0.0
  %1527 = vmatprep.mubr.f32.mxu0 0.0
  %v1528 = vand.u32 %v1285, 4294901760
  %v1529 = vsub.f32 %v1285, %v1528
  %1530 = vmatmul.mubr.f32.gmra.mrb[0].mxu0 %v1529
  %v1531 = vpop.f32.mrb[0].mxu0
  %v1532 = vadd.f32 %v1455, %v1531
  %v1533 = vpop.f32.mrb[0].mxu0
  %v1534 = vadd.f32 %v1457, %v1533
  %1535 = vdwg.mxu0
  %v1536 = vand.u32 %v1291, 4294901760
  %1537 = vmatprep.subr.mxu0 %v1536
  %v1538 = vand.u32 %v1288, 4294901760
  %1539 = vmatpush1.msra.mxu0 %v1538
  %1540 = vmatprep.subr.mxu0 0.0
  %1541 = vmatpush1.msra.mxu0 0.0
  %1542 = vmatprep.subr.mxu0 0.0
  %1543 = vmatpush1.msra.mxu0 0.0
  %1544 = vmatprep.subr.mxu0 0.0
  %1545 = vmatpush1.msra.mxu0 0.0
  %1546 = vmatprep.subr.mxu0 0.0
  %1547 = vmatpush1.msra.mxu0 0.0
  %1548 = vmatprep.subr.mxu0 0.0
  %1549 = vmatpush1.msra.mxu0 0.0
  %1550 = vmatprep.subr.mxu0 0.0
  %1551 = vmatpush1.msra.mxu0 0.0
  %1552 = vmatprep.subr.mxu0 0.0
  %1553 = vmatpush1.msra.mxu0 0.0
  %1554 = vmatprep.subr.mxu0 0.0
  %1555 = vmatpush1.msra.mxu0 0.0
  %1556 = vmatprep.subr.mxu0 0.0
  %1557 = vmatpush1.msra.mxu0 0.0
  %1558 = vmatprep.subr.mxu0 0.0
  %1559 = vmatpush1.msra.mxu0 0.0
  %1560 = vmatprep.subr.mxu0 0.0
  %1561 = vmatpush1.msra.mxu0 0.0
  %1562 = vmatprep.subr.mxu0 0.0
  %1563 = vmatpush1.msra.mxu0 0.0
  %1564 = vmatprep.subr.mxu0 0.0
  %1565 = vmatpush1.msra.mxu0 0.0
  %1566 = vmatprep.subr.mxu0 0.0
  %1567 = vmatpush1.msra.mxu0 0.0
  %1568 = vmatprep.subr.mxu0 0.0
  %1569 = vmatpush1.msra.mxu0 0.0
  %1570 = vmatprep.subr.mxu0 0.0
  %1571 = vmatpush1.msra.mxu0 0.0
  %1572 = vmatprep.subr.mxu0 0.0
  %1573 = vmatpush1.msra.mxu0 0.0
  %1574 = vmatprep.subr.mxu0 0.0
  %1575 = vmatpush1.msra.mxu0 0.0
  %1576 = vmatprep.subr.mxu0 0.0
  %1577 = vmatpush1.msra.mxu0 0.0
  %1578 = vmatprep.subr.mxu0 0.0
  %1579 = vmatpush1.msra.mxu0 0.0
  %1580 = vmatprep.subr.mxu0 0.0
  %1581 = vmatpush1.msra.mxu0 0.0
  %1582 = vmatprep.subr.mxu0 0.0
  %1583 = vmatpush1.msra.mxu0 0.0
  %1584 = vmatprep.subr.mxu0 0.0
  %1585 = vmatpush1.msra.mxu0 0.0
  %1586 = vmatprep.subr.mxu0 0.0
  %1587 = vmatpush1.msra.mxu0 0.0
  %1588 = vmatprep.subr.mxu0 0.0
  %1589 = vmatpush1.msra.mxu0 0.0
  %1590 = vmatprep.subr.mxu0 0.0
  %1591 = vmatpush1.msra.mxu0 0.0
  %1592 = vmatprep.subr.mxu0 0.0
  %1593 = vmatpush1.msra.mxu0 0.0
  %1594 = vmatprep.subr.mxu0 0.0
  %1595 = vmatpush1.msra.mxu0 0.0
  %1596 = vmatprep.subr.mxu0 0.0
  %1597 = vmatpush1.msra.mxu0 0.0
  %1598 = vmatprep.subr.mxu0 0.0
  %1599 = vmatpush1.msra.mxu0 0.0
  %1600 = vmatprep.subr.mxu0 0.0
  %1601 = vmatpush1.msra.mxu0 0.0
  %1602 = vmatprep.mubr.f32.mxu0 0.0
  %v1603 = vand.u32 %v1285, 4294901760
  %v1604 = vsub.f32 %v1285, %v1603
  %v1605 = vand.u32 %v1604, 4294901760
  %1606 = vmatmul.mubr.f32.gmra.mrb[0].mxu0 %v1605
  %v1607 = vpop.f32.mrb[0].mxu0
  %v1608 = vadd.f32 %v1532, %v1607
  %v1609 = vpop.f32.mrb[0].mxu0
  %v1610 = vadd.f32 %v1534, %v1609
  %1611 = vdwg.mxu0
  %v1612 = vand.u32 %v1291, 4294901760
  %v1613 = vsub.f32 %v1291, %v1612
  %v1614 = vand.u32 %v1613, 4294901760
  %1615 = vmatprep.subr.mxu0 %v1614
  %v1616 = vand.u32 %v1288, 4294901760
  %v1617 = vsub.f32 %v1288, %v1616
  %v1618 = vand.u32 %v1617, 4294901760
  %1619 = vmatpush1.msra.mxu0 %v1618
  %1620 = vmatprep.subr.mxu0 0.0
  %1621 = vmatpush1.msra.mxu0 0.0
  %1622 = vmatprep.subr.mxu0 0.0
  %1623 = vmatpush1.msra.mxu0 0.0
  %1624 = vmatprep.subr.mxu0 0.0
  %1625 = vmatpush1.msra.mxu0 0.0
  %1626 = vmatprep.subr.mxu0 0.0
  %1627 = vmatpush1.msra.mxu0 0.0
  %1628 = vmatprep.subr.mxu0 0.0
  %1629 = vmatpush1.msra.mxu0 0.0
  %1630 = vmatprep.subr.mxu0 0.0
  %1631 = vmatpush1.msra.mxu0 0.0
  %1632 = vmatprep.subr.mxu0 0.0
  %1633 = vmatpush1.msra.mxu0 0.0
  %1634 = vmatprep.subr.mxu0 0.0
  %1635 = vmatpush1.msra.mxu0 0.0
  %1636 = vmatprep.subr.mxu0 0.0
  %1637 = vmatpush1.msra.mxu0 0.0
  %1638 = vmatprep.subr.mxu0 0.0
  %1639 = vmatpush1.msra.mxu0 0.0
  %1640 = vmatprep.subr.mxu0 0.0
  %1641 = vmatpush1.msra.mxu0 0.0
  %1642 = vmatprep.subr.mxu0 0.0
  %1643 = vmatpush1.msra.mxu0 0.0
  %1644 = vmatprep.subr.mxu0 0.0
  %1645 = vmatpush1.msra.mxu0 0.0
  %1646 = vmatprep.subr.mxu0 0.0
  %1647 = vmatpush1.msra.mxu0 0.0
  %1648 = vmatprep.subr.mxu0 0.0
  %1649 = vmatpush1.msra.mxu0 0.0
  %1650 = vmatprep.subr.mxu0 0.0
  %1651 = vmatpush1.msra.mxu0 0.0
  %1652 = vmatprep.subr.mxu0 0.0
  %1653 = vmatpush1.msra.mxu0 0.0
  %1654 = vmatprep.subr.mxu0 0.0
  %1655 = vmatpush1.msra.mxu0 0.0
  %1656 = vmatprep.subr.mxu0 0.0
  %1657 = vmatpush1.msra.mxu0 0.0
  %1658 = vmatprep.subr.mxu0 0.0
  %1659 = vmatpush1.msra.mxu0 0.0
  %1660 = vmatprep.subr.mxu0 0.0
  %1661 = vmatpush1.msra.mxu0 0.0
  %1662 = vmatprep.subr.mxu0 0.0
  %1663 = vmatpush1.msra.mxu0 0.0
  %1664 = vmatprep.subr.mxu0 0.0
  %1665 = vmatpush1.msra.mxu0 0.0
  %1666 = vmatprep.subr.mxu0 0.0
  %1667 = vmatpush1.msra.mxu0 0.0
  %1668 = vmatprep.subr.mxu0 0.0
  %1669 = vmatpush1.msra.mxu0 0.0
  %1670 = vmatprep.subr.mxu0 0.0
  %1671 = vmatpush1.msra.mxu0 0.0
  %1672 = vmatprep.subr.mxu0 0.0
  %1673 = vmatpush1.msra.mxu0 0.0
  %1674 = vmatprep.subr.mxu0 0.0
  %1675 = vmatpush1.msra.mxu0 0.0
  %1676 = vmatprep.subr.mxu0 0.0
  %1677 = vmatpush1.msra.mxu0 0.0
  %1678 = vmatprep.subr.mxu0 0.0
  %1679 = vmatpush1.msra.mxu0 0.0
  %1680 = vmatprep.subr.mxu0 0.0
  %1681 = vmatpush1.msra.mxu0 0.0
  %1682 = vmatprep.mubr.f32.mxu0 0.0
  %v1683 = vand.u32 %v1285, 4294901760
  %1684 = vmatmul.mubr.f32.gmra.mrb[0].mxu0 %v1683
  %v1685 = vpop.f32.mrb[0].mxu0
  %v1686 = vadd.f32 %v1608, %v1685
  %v1687 = vpop.f32.mrb[0].mxu0
  %v1688 = vadd.f32 %v1610, %v1687
  %1689 = vdwg.mxu0
  %v1690 = vand.u32 %v1291, 4294901760
  %1691 = vmatprep.subr.mxu0 %v1690
  %v1692 = vand.u32 %v1288, 4294901760
  %1693 = vmatpush1.msra.mxu0 %v1692
  %1694 = vmatprep.subr.mxu0 0.0
  %1695 = vmatpush1.msra.mxu0 0.0
  %1696 = vmatprep.subr.mxu0 0.0
  %1697 = vmatpush1.msra.mxu0 0.0
  %1698 = vmatprep.subr.mxu0 0.0
  %1699 = vmatpush1.msra.mxu0 0.0
  %1700 = vmatprep.subr.mxu0 0.0
  %1701 = vmatpush1.msra.mxu0 0.0
  %1702 = vmatprep.subr.mxu0 0.0
  %1703 = vmatpush1.msra.mxu0 0.0
  %1704 = vmatprep.subr.mxu0 0.0
  %1705 = vmatpush1.msra.mxu0 0.0
  %1706 = vmatprep.subr.mxu0 0.0
  %1707 = vmatpush1.msra.mxu0 0.0
  %1708 = vmatprep.subr.mxu0 0.0
  %1709 = vmatpush1.msra.mxu0 0.0
  %1710 = vmatprep.subr.mxu0 0.0
  %1711 = vmatpush1.msra.mxu0 0.0
  %1712 = vmatprep.subr.mxu0 0.0
  %1713 = vmatpush1.msra.mxu0 0.0
  %1714 = vmatprep.subr.mxu0 0.0
  %1715 = vmatpush1.msra.mxu0 0.0
  %1716 = vmatprep.subr.mxu0 0.0
  %1717 = vmatpush1.msra.mxu0 0.0
  %1718 = vmatprep.subr.mxu0 0.0
  %1719 = vmatpush1.msra.mxu0 0.0
  %1720 = vmatprep.subr.mxu0 0.0
  %1721 = vmatpush1.msra.mxu0 0.0
  %1722 = vmatprep.subr.mxu0 0.0
  %1723 = vmatpush1.msra.mxu0 0.0
  %1724 = vmatprep.subr.mxu0 0.0
  %1725 = vmatpush1.msra.mxu0 0.0
  %1726 = vmatprep.subr.mxu0 0.0
  %1727 = vmatpush1.msra.mxu0 0.0
  %1728 = vmatprep.subr.mxu0 0.0
  %1729 = vmatpush1.msra.mxu0 0.0
  %1730 = vmatprep.subr.mxu0 0.0
  %1731 = vmatpush1.msra.mxu0 0.0
  %1732 = vmatprep.subr.mxu0 0.0
  %1733 = vmatpush1.msra.mxu0 0.0
  %1734 = vmatprep.subr.mxu0 0.0
  %1735 = vmatpush1.msra.mxu0 0.0
  %1736 = vmatprep.subr.mxu0 0.0
  %1737 = vmatpush1.msra.mxu0 0.0
  %1738 = vmatprep.subr.mxu0 0.0
  %1739 = vmatpush1.msra.mxu0 0.0
  %1740 = vmatprep.subr.mxu0 0.0
  %1741 = vmatpush1.msra.mxu0 0.0
  %1742 = vmatprep.subr.mxu0 0.0
  %1743 = vmatpush1.msra.mxu0 0.0
  %1744 = vmatprep.subr.mxu0 0.0
  %1745 = vmatpush1.msra.mxu0 0.0
  %1746 = vmatprep.subr.mxu0 0.0
  %1747 = vmatpush1.msra.mxu0 0.0
  %1748 = vmatprep.subr.mxu0 0.0
  %1749 = vmatpush1.msra.mxu0 0.0
  %1750 = vmatprep.subr.mxu0 0.0
  %1751 = vmatpush1.msra.mxu0 0.0
  %1752 = vmatprep.subr.mxu0 0.0
  %1753 = vmatpush1.msra.mxu0 0.0
  %1754 = vmatprep.subr.mxu0 0.0
  %1755 = vmatpush1.msra.mxu0 0.0
  %1756 = vmatprep.mubr.f32.mxu0 0.0
  %v1757 = vand.u32 %v1285, 4294901760
  %1758 = vmatmul.mubr.f32.gmra.mrb[0].mxu0 %v1757
  %v1759 = vpop.f32.mrb[0].mxu0
  %v1760 = vadd.f32 %v1686, %v1759
  %v1761 = vpop.f32.mrb[0].mxu0
  %v1762 = vadd.f32 %v1688, %v1761
  %1763 = vdwg.mxu0
  %v1764 = vand.u32 %v1297, 4294901760
  %1765 = vmatprep.subr.mxu0 %v1764
  %v1766 = vand.u32 %v1294, 4294901760
  %1767 = vmatpush1.msra.mxu0 %v1766
  %1768 = vmatprep.subr.mxu0 0.0
  %1769 = vmatpush1.msra.mxu0 0.0
  %1770 = vmatprep.subr.mxu0 0.0
  %1771 = vmatpush1.msra.mxu0 0.0
  %1772 = vmatprep.subr.mxu0 0.0
  %1773 = vmatpush1.msra.mxu0 0.0
  %1774 = vmatprep.subr.mxu0 0.0
  %1775 = vmatpush1.msra.mxu0 0.0
  %1776 = vmatprep.subr.mxu0 0.0
  %1777 = vmatpush1.msra.mxu0 0.0
  %1778 = vmatprep.subr.mxu0 0.0
  %1779 = vmatpush1.msra.mxu0 0.0
  %1780 = vmatprep.subr.mxu0 0.0
  %1781 = vmatpush1.msra.mxu0 0.0
  %1782 = vmatprep.subr.mxu0 0.0
  %1783 = vmatpush1.msra.mxu0 0.0
  %1784 = vmatprep.subr.mxu0 0.0
  %1785 = vmatpush1.msra.mxu0 0.0
  %1786 = vmatprep.subr.mxu0 0.0
  %1787 = vmatpush1.msra.mxu0 0.0
  %1788 = vmatprep.subr.mxu0 0.0
  %1789 = vmatpush1.msra.mxu0 0.0
  %1790 = vmatprep.subr.mxu0 0.0
  %1791 = vmatpush1.msra.mxu0 0.0
  %1792 = vmatprep.subr.mxu0 0.0
  %1793 = vmatpush1.msra.mxu0 0.0
  %1794 = vmatprep.subr.mxu0 0.0
  %1795 = vmatpush1.msra.mxu0 0.0
  %1796 = vmatprep.subr.mxu0 0.0
  %1797 = vmatpush1.msra.mxu0 0.0
  %1798 = vmatprep.subr.mxu0 0.0
  %1799 = vmatpush1.msra.mxu0 0.0
  %1800 = vmatprep.subr.mxu0 0.0
  %1801 = vmatpush1.msra.mxu0 0.0
  %1802 = vmatprep.subr.mxu0 0.0
  %1803 = vmatpush1.msra.mxu0 0.0
  %1804 = vmatprep.subr.mxu0 0.0
  %1805 = vmatpush1.msra.mxu0 0.0
  %1806 = vmatprep.subr.mxu0 0.0
  %1807 = vmatpush1.msra.mxu0 0.0
  %1808 = vmatprep.subr.mxu0 0.0
  %1809 = vmatpush1.msra.mxu0 0.0
  %1810 = vmatprep.subr.mxu0 0.0
  %1811 = vmatpush1.msra.mxu0 0.0
  %1812 = vmatprep.subr.mxu0 0.0
  %1813 = vmatpush1.msra.mxu0 0.0
  %1814 = vmatprep.subr.mxu0 0.0
  %1815 = vmatpush1.msra.mxu0 0.0
  %1816 = vmatprep.subr.mxu0 0.0
  %1817 = vmatpush1.msra.mxu0 0.0
  %1818 = vmatprep.subr.mxu0 0.0
  %1819 = vmatpush1.msra.mxu0 0.0
  %1820 = vmatprep.subr.mxu0 0.0
  %1821 = vmatpush1.msra.mxu0 0.0
  %1822 = vmatprep.subr.mxu0 0.0
  %1823 = vmatpush1.msra.mxu0 0.0
  %1824 = vmatprep.subr.mxu0 0.0
  %1825 = vmatpush1.msra.mxu0 0.0
  %1826 = vmatprep.subr.mxu0 0.0
  %1827 = vmatpush1.msra.mxu0 0.0
  %1828 = vmatprep.subr.mxu0 0.0
  %1829 = vmatpush1.msra.mxu0 0.0
  %1830 = vmatprep.mubr.f32.mxu0 0.0
  %v1831 = vand.u32 %v1285, 4294901760
  %v1832 = vsub.f32 %v1285, %v1831
  %v1833 = vand.u32 %v1832, 4294901760
  %v1834 = vsub.f32 %v1832, %v1833
  %v1835 = vand.u32 %v1834, 4294901760
  %1836 = vmatmul.mubr.f32.gmra.mrb[0].mxu0 %v1835
  %v1837 = vpop.f32.mrb[0].mxu0
  %v1838 = vadd.f32 0.0, %v1837
  %v1839 = vpop.f32.mrb[0].mxu0
  %v1840 = vadd.f32 0.0, %v1839
  %1841 = vdwg.mxu0
  %v1842 = vand.u32 %v1297, 4294901760
  %v1843 = vsub.f32 %v1297, %v1842
  %v1844 = vand.u32 %v1843, 4294901760
  %v1845 = vsub.f32 %v1843, %v1844
  %v1846 = vand.u32 %v1845, 4294901760
  %1847 = vmatprep.subr.mxu0 %v1846
  %v1848 = vand.u32 %v1294, 4294901760
  %v1849 = vsub.f32 %v1294, %v1848
  %v1850 = vand.u32 %v1849, 4294901760
  %v1851 = vsub.f32 %v1849, %v1850
  %v1852 = vand.u32 %v1851, 4294901760
  %1853 = vmatpush1.msra.mxu0 %v1852
  %1854 = vmatprep.subr.mxu0 0.0
  %1855 = vmatpush1.msra.mxu0 0.0
  %1856 = vmatprep.subr.mxu0 0.0
  %1857 = vmatpush1.msra.mxu0 0.0
  %1858 = vmatprep.subr.mxu0 0.0
  %1859 = vmatpush1.msra.mxu0 0.0
  %1860 = vmatprep.subr.mxu0 0.0
  %1861 = vmatpush1.msra.mxu0 0.0
  %1862 = vmatprep.subr.mxu0 0.0
  %1863 = vmatpush1.msra.mxu0 0.0
  %1864 = vmatprep.subr.mxu0 0.0
  %1865 = vmatpush1.msra.mxu0 0.0
  %1866 = vmatprep.subr.mxu0 0.0
  %1867 = vmatpush1.msra.mxu0 0.0
  %1868 = vmatprep.subr.mxu0 0.0
  %1869 = vmatpush1.msra.mxu0 0.0
  %1870 = vmatprep.subr.mxu0 0.0
  %1871 = vmatpush1.msra.mxu0 0.0
  %1872 = vmatprep.subr.mxu0 0.0
  %1873 = vmatpush1.msra.mxu0 0.0
  %1874 = vmatprep.subr.mxu0 0.0
  %1875 = vmatpush1.msra.mxu0 0.0
  %1876 = vmatprep.subr.mxu0 0.0
  %1877 = vmatpush1.msra.mxu0 0.0
  %1878 = vmatprep.subr.mxu0 0.0
  %1879 = vmatpush1.msra.mxu0 0.0
  %1880 = vmatprep.subr.mxu0 0.0
  %1881 = vmatpush1.msra.mxu0 0.0
  %1882 = vmatprep.subr.mxu0 0.0
  %1883 = vmatpush1.msra.mxu0 0.0
  %1884 = vmatprep.subr.mxu0 0.0
  %1885 = vmatpush1.msra.mxu0 0.0
  %1886 = vmatprep.subr.mxu0 0.0
  %1887 = vmatpush1.msra.mxu0 0.0
  %1888 = vmatprep.subr.mxu0 0.0
  %1889 = vmatpush1.msra.mxu0 0.0
  %1890 = vmatprep.subr.mxu0 0.0
  %1891 = vmatpush1.msra.mxu0 0.0
  %1892 = vmatprep.subr.mxu0 0.0
  %1893 = vmatpush1.msra.mxu0 0.0
  %1894 = vmatprep.subr.mxu0 0.0
  %1895 = vmatpush1.msra.mxu0 0.0
  %1896 = vmatprep.subr.mxu0 0.0
  %1897 = vmatpush1.msra.mxu0 0.0
  %1898 = vmatprep.subr.mxu0 0.0
  %1899 = vmatpush1.msra.mxu0 0.0
  %1900 = vmatprep.subr.mxu0 0.0
  %1901 = vmatpush1.msra.mxu0 0.0
  %1902 = vmatprep.subr.mxu0 0.0
  %1903 = vmatpush1.msra.mxu0 0.0
  %1904 = vmatprep.subr.mxu0 0.0
  %1905 = vmatpush1.msra.mxu0 0.0
  %1906 = vmatprep.subr.mxu0 0.0
  %1907 = vmatpush1.msra.mxu0 0.0
  %1908 = vmatprep.subr.mxu0 0.0
  %1909 = vmatpush1.msra.mxu0 0.0
  %1910 = vmatprep.subr.mxu0 0.0
  %1911 = vmatpush1.msra.mxu0 0.0
  %1912 = vmatprep.subr.mxu0 0.0
  %1913 = vmatpush1.msra.mxu0 0.0
  %1914 = vmatprep.subr.mxu0 0.0
  %1915 = vmatpush1.msra.mxu0 0.0
  %1916 = vmatprep.mubr.f32.mxu0 0.0
  %v1917 = vand.u32 %v1285, 4294901760
  %1918 = vmatmul.mubr.f32.gmra.mrb[0].mxu0 %v1917
  %v1919 = vpop.f32.mrb[0].mxu0
  %v1920 = vadd.f32 %v1838, %v1919
  %v1921 = vpop.f32.mrb[0].mxu0
  %v1922 = vadd.f32 %v1840, %v1921
  %1923 = vdwg.mxu0
  %v1924 = vand.u32 %v1297, 4294901760
  %v1925 = vsub.f32 %v1297, %v1924
  %1926 = vmatprep.subr.mxu0 %v1925
  %v1927 = vand.u32 %v1294, 4294901760
  %v1928 = vsub.f32 %v1294, %v1927
  %1929 = vmatpush1.msra.mxu0 %v1928
  %1930 = vmatprep.subr.mxu0 0.0
  %1931 = vmatpush1.msra.mxu0 0.0
  %1932 = vmatprep.subr.mxu0 0.0
  %1933 = vmatpush1.msra.mxu0 0.0
  %1934 = vmatprep.subr.mxu0 0.0
  %1935 = vmatpush1.msra.mxu0 0.0
  %1936 = vmatprep.subr.mxu0 0.0
  %1937 = vmatpush1.msra.mxu0 0.0
  %1938 = vmatprep.subr.mxu0 0.0
  %1939 = vmatpush1.msra.mxu0 0.0
  %1940 = vmatprep.subr.mxu0 0.0
  %1941 = vmatpush1.msra.mxu0 0.0
  %1942 = vmatprep.subr.mxu0 0.0
  %1943 = vmatpush1.msra.mxu0 0.0
  %1944 = vmatprep.subr.mxu0 0.0
  %1945 = vmatpush1.msra.mxu0 0.0
  %1946 = vmatprep.subr.mxu0 0.0
  %1947 = vmatpush1.msra.mxu0 0.0
  %1948 = vmatprep.subr.mxu0 0.0
  %1949 = vmatpush1.msra.mxu0 0.0
  %1950 = vmatprep.subr.mxu0 0.0
  %1951 = vmatpush1.msra.mxu0 0.0
  %1952 = vmatprep.subr.mxu0 0.0
  %1953 = vmatpush1.msra.mxu0 0.0
  %1954 = vmatprep.subr.mxu0 0.0
  %1955 = vmatpush1.msra.mxu0 0.0
  %1956 = vmatprep.subr.mxu0 0.0
  %1957 = vmatpush1.msra.mxu0 0.0
  %1958 = vmatprep.subr.mxu0 0.0
  %1959 = vmatpush1.msra.mxu0 0.0
  %1960 = vmatprep.subr.mxu0 0.0
  %1961 = vmatpush1.msra.mxu0 0.0
  %1962 = vmatprep.subr.mxu0 0.0
  %1963 = vmatpush1.msra.mxu0 0.0
  %1964 = vmatprep.subr.mxu0 0.0
  %1965 = vmatpush1.msra.mxu0 0.0
  %1966 = vmatprep.subr.mxu0 0.0
  %1967 = vmatpush1.msra.mxu0 0.0
  %1968 = vmatprep.subr.mxu0 0.0
  %1969 = vmatpush1.msra.mxu0 0.0
  %1970 = vmatprep.subr.mxu0 0.0
  %1971 = vmatpush1.msra.mxu0 0.0
  %1972 = vmatprep.subr.mxu0 0.0
  %1973 = vmatpush1.msra.mxu0 0.0
  %1974 = vmatprep.subr.mxu0 0.0
  %1975 = vmatpush1.msra.mxu0 0.0
  %1976 = vmatprep.subr.mxu0 0.0
  %1977 = vmatpush1.msra.mxu0 0.0
  %1978 = vmatprep.subr.mxu0 0.0
  %1979 = vmatpush1.msra.mxu0 0.0
  %1980 = vmatprep.subr.mxu0 0.0
  %1981 = vmatpush1.msra.mxu0 0.0
  %1982 = vmatprep.subr.mxu0 0.0
  %1983 = vmatpush1.msra.mxu0 0.0
  %1984 = vmatprep.subr.mxu0 0.0
  %1985 = vmatpush1.msra.mxu0 0.0
  %1986 = vmatprep.subr.mxu0 0.0
  %1987 = vmatpush1.msra.mxu0 0.0
  %1988 = vmatprep.subr.mxu0 0.0
  %1989 = vmatpush1.msra.mxu0 0.0
  %1990 = vmatprep.subr.mxu0 0.0
  %1991 = vmatpush1.msra.mxu0 0.0
  %1992 = vmatprep.mubr.f32.mxu0 0.0
  %v1993 = vand.u32 %v1285, 4294901760
  %v1994 = vsub.f32 %v1285, %v1993
  %1995 = vmatmul.mubr.f32.gmra.mrb[0].mxu0 %v1994
  %v1996 = vpop.f32.mrb[0].mxu0
  %v1997 = vadd.f32 %v1920, %v1996
  %v1998 = vpop.f32.mrb[0].mxu0
  %v1999 = vadd.f32 %v1922, %v1998
  %2000 = vdwg.mxu0
  %v2001 = vand.u32 %v1297, 4294901760
  %2002 = vmatprep.subr.mxu0 %v2001
  %v2003 = vand.u32 %v1294, 4294901760
  %2004 = vmatpush1.msra.mxu0 %v2003
  %2005 = vmatprep.subr.mxu0 0.0
  %2006 = vmatpush1.msra.mxu0 0.0
  %2007 = vmatprep.subr.mxu0 0.0
  %2008 = vmatpush1.msra.mxu0 0.0
  %2009 = vmatprep.subr.mxu0 0.0
  %2010 = vmatpush1.msra.mxu0 0.0
  %2011 = vmatprep.subr.mxu0 0.0
  %2012 = vmatpush1.msra.mxu0 0.0
  %2013 = vmatprep.subr.mxu0 0.0
  %2014 = vmatpush1.msra.mxu0 0.0
  %2015 = vmatprep.subr.mxu0 0.0
  %2016 = vmatpush1.msra.mxu0 0.0
  %2017 = vmatprep.subr.mxu0 0.0
  %2018 = vmatpush1.msra.mxu0 0.0
  %2019 = vmatprep.subr.mxu0 0.0
  %2020 = vmatpush1.msra.mxu0 0.0
  %2021 = vmatprep.subr.mxu0 0.0
  %2022 = vmatpush1.msra.mxu0 0.0
  %2023 = vmatprep.subr.mxu0 0.0
  %2024 = vmatpush1.msra.mxu0 0.0
  %2025 = vmatprep.subr.mxu0 0.0
  %2026 = vmatpush1.msra.mxu0 0.0
  %2027 = vmatprep.subr.mxu0 0.0
  %2028 = vmatpush1.msra.mxu0 0.0
  %2029 = vmatprep.subr.mxu0 0.0
  %2030 = vmatpush1.msra.mxu0 0.0
  %2031 = vmatprep.subr.mxu0 0.0
  %2032 = vmatpush1.msra.mxu0 0.0
  %2033 = vmatprep.subr.mxu0 0.0
  %2034 = vmatpush1.msra.mxu0 0.0
  %2035 = vmatprep.subr.mxu0 0.0
  %2036 = vmatpush1.msra.mxu0 0.0
  %2037 = vmatprep.subr.mxu0 0.0
  %2038 = vmatpush1.msra.mxu0 0.0
  %2039 = vmatprep.subr.mxu0 0.0
  %2040 = vmatpush1.msra.mxu0 0.0
  %2041 = vmatprep.subr.mxu0 0.0
  %2042 = vmatpush1.msra.mxu0 0.0
  %2043 = vmatprep.subr.mxu0 0.0
  %2044 = vmatpush1.msra.mxu0 0.0
  %2045 = vmatprep.subr.mxu0 0.0
  %2046 = vmatpush1.msra.mxu0 0.0
  %2047 = vmatprep.subr.mxu0 0.0
  %2048 = vmatpush1.msra.mxu0 0.0
  %2049 = vmatprep.subr.mxu0 0.0
  %2050 = vmatpush1.msra.mxu0 0.0
  %2051 = vmatprep.subr.mxu0 0.0
  %2052 = vmatpush1.msra.mxu0 0.0
  %2053 = vmatprep.subr.mxu0 0.0
  %2054 = vmatpush1.msra.mxu0 0.0
  %2055 = vmatprep.subr.mxu0 0.0
  %2056 = vmatpush1.msra.mxu0 0.0
  %2057 = vmatprep.subr.mxu0 0.0
  %2058 = vmatpush1.msra.mxu0 0.0
  %2059 = vmatprep.subr.mxu0 0.0
  %2060 = vmatpush1.msra.mxu0 0.0
  %2061 = vmatprep.subr.mxu0 0.0
  %2062 = vmatpush1.msra.mxu0 0.0
  %2063 = vmatprep.subr.mxu0 0.0
  %2064 = vmatpush1.msra.mxu0 0.0
  %2065 = vmatprep.subr.mxu0 0.0
  %2066 = vmatpush1.msra.mxu0 0.0
  %2067 = vmatprep.mubr.f32.mxu0 0.0
  %v2068 = vand.u32 %v1285, 4294901760
  %v2069 = vsub.f32 %v1285, %v2068
  %v2070 = vand.u32 %v2069, 4294901760
  %2071 = vmatmul.mubr.f32.gmra.mrb[0].mxu0 %v2070
  %v2072 = vpop.f32.mrb[0].mxu0
  %v2073 = vadd.f32 %v1997, %v2072
  %v2074 = vpop.f32.mrb[0].mxu0
  %v2075 = vadd.f32 %v1999, %v2074
  %2076 = vdwg.mxu0
  %v2077 = vand.u32 %v1297, 4294901760
  %v2078 = vsub.f32 %v1297, %v2077
  %v2079 = vand.u32 %v2078, 4294901760
  %2080 = vmatprep.subr.mxu0 %v2079
  %v2081 = vand.u32 %v1294, 4294901760
  %v2082 = vsub.f32 %v1294, %v2081
  %v2083 = vand.u32 %v2082, 4294901760
  %2084 = vmatpush1.msra.mxu0 %v2083
  %2085 = vmatprep.subr.mxu0 0.0
  %2086 = vmatpush1.msra.mxu0 0.0
  %2087 = vmatprep.subr.mxu0 0.0
  %2088 = vmatpush1.msra.mxu0 0.0
  %2089 = vmatprep.subr.mxu0 0.0
  %2090 = vmatpush1.msra.mxu0 0.0
  %2091 = vmatprep.subr.mxu0 0.0
  %2092 = vmatpush1.msra.mxu0 0.0
  %2093 = vmatprep.subr.mxu0 0.0
  %2094 = vmatpush1.msra.mxu0 0.0
  %2095 = vmatprep.subr.mxu0 0.0
  %2096 = vmatpush1.msra.mxu0 0.0
  %2097 = vmatprep.subr.mxu0 0.0
  %2098 = vmatpush1.msra.mxu0 0.0
  %2099 = vmatprep.subr.mxu0 0.0
  %2100 = vmatpush1.msra.mxu0 0.0
  %2101 = vmatprep.subr.mxu0 0.0
  %2102 = vmatpush1.msra.mxu0 0.0
  %2103 = vmatprep.subr.mxu0 0.0
  %2104 = vmatpush1.msra.mxu0 0.0
  %2105 = vmatprep.subr.mxu0 0.0
  %2106 = vmatpush1.msra.mxu0 0.0
  %2107 = vmatprep.subr.mxu0 0.0
  %2108 = vmatpush1.msra.mxu0 0.0
  %2109 = vmatprep.subr.mxu0 0.0
  %2110 = vmatpush1.msra.mxu0 0.0
  %2111 = vmatprep.subr.mxu0 0.0
  %2112 = vmatpush1.msra.mxu0 0.0
  %2113 = vmatprep.subr.mxu0 0.0
  %2114 = vmatpush1.msra.mxu0 0.0
  %2115 = vmatprep.subr.mxu0 0.0
  %2116 = vmatpush1.msra.mxu0 0.0
  %2117 = vmatprep.subr.mxu0 0.0
  %2118 = vmatpush1.msra.mxu0 0.0
  %2119 = vmatprep.subr.mxu0 0.0
  %2120 = vmatpush1.msra.mxu0 0.0
  %2121 = vmatprep.subr.mxu0 0.0
  %2122 = vmatpush1.msra.mxu0 0.0
  %2123 = vmatprep.subr.mxu0 0.0
  %2124 = vmatpush1.msra.mxu0 0.0
  %2125 = vmatprep.subr.mxu0 0.0
  %2126 = vmatpush1.msra.mxu0 0.0
  %2127 = vmatprep.subr.mxu0 0.0
  %2128 = vmatpush1.msra.mxu0 0.0
  %2129 = vmatprep.subr.mxu0 0.0
  %2130 = vmatpush1.msra.mxu0 0.0
  %2131 = vmatprep.subr.mxu0 0.0
  %2132 = vmatpush1.msra.mxu0 0.0
  %2133 = vmatprep.subr.mxu0 0.0
  %2134 = vmatpush1.msra.mxu0 0.0
  %2135 = vmatprep.subr.mxu0 0.0
  %2136 = vmatpush1.msra.mxu0 0.0
  %2137 = vmatprep.subr.mxu0 0.0
  %2138 = vmatpush1.msra.mxu0 0.0
  %2139 = vmatprep.subr.mxu0 0.0
  %2140 = vmatpush1.msra.mxu0 0.0
  %2141 = vmatprep.subr.mxu0 0.0
  %2142 = vmatpush1.msra.mxu0 0.0
  %2143 = vmatprep.subr.mxu0 0.0
  %2144 = vmatpush1.msra.mxu0 0.0
  %2145 = vmatprep.subr.mxu0 0.0
  %2146 = vmatpush1.msra.mxu0 0.0
  %2147 = vmatprep.mubr.f32.mxu0 0.0
  %v2148 = vand.u32 %v1285, 4294901760
  %2149 = vmatmul.mubr.f32.gmra.mrb[0].mxu0 %v2148
  %v2150 = vpop.f32.mrb[0].mxu0
  %v2151 = vadd.f32 %v2073, %v2150
  %v2152 = vpop.f32.mrb[0].mxu0
  %v2153 = vadd.f32 %v2075, %v2152
  %2154 = vdwg.mxu0
  %v2155 = vand.u32 %v1297, 4294901760
  %2156 = vmatprep.subr.mxu0 %v2155
  %v2157 = vand.u32 %v1294, 4294901760
  %2158 = vmatpush1.msra.mxu0 %v2157
  %2159 = vmatprep.subr.mxu0 0.0
  %2160 = vmatpush1.msra.mxu0 0.0
  %2161 = vmatprep.subr.mxu0 0.0
  %2162 = vmatpush1.msra.mxu0 0.0
  %2163 = vmatprep.subr.mxu0 0.0
  %2164 = vmatpush1.msra.mxu0 0.0
  %2165 = vmatprep.subr.mxu0 0.0
  %2166 = vmatpush1.msra.mxu0 0.0
  %2167 = vmatprep.subr.mxu0 0.0
  %2168 = vmatpush1.msra.mxu0 0.0
  %2169 = vmatprep.subr.mxu0 0.0
  %2170 = vmatpush1.msra.mxu0 0.0
  %2171 = vmatprep.subr.mxu0 0.0
  %2172 = vmatpush1.msra.mxu0 0.0
  %2173 = vmatprep.subr.mxu0 0.0
  %2174 = vmatpush1.msra.mxu0 0.0
  %2175 = vmatprep.subr.mxu0 0.0
  %2176 = vmatpush1.msra.mxu0 0.0
  %2177 = vmatprep.subr.mxu0 0.0
  %2178 = vmatpush1.msra.mxu0 0.0
  %2179 = vmatprep.subr.mxu0 0.0
  %2180 = vmatpush1.msra.mxu0 0.0
  %2181 = vmatprep.subr.mxu0 0.0
  %2182 = vmatpush1.msra.mxu0 0.0
  %2183 = vmatprep.subr.mxu0 0.0
  %2184 = vmatpush1.msra.mxu0 0.0
  %2185 = vmatprep.subr.mxu0 0.0
  %2186 = vmatpush1.msra.mxu0 0.0
  %2187 = vmatprep.subr.mxu0 0.0
  %2188 = vmatpush1.msra.mxu0 0.0
  %2189 = vmatprep.subr.mxu0 0.0
  %2190 = vmatpush1.msra.mxu0 0.0
  %2191 = vmatprep.subr.mxu0 0.0
  %2192 = vmatpush1.msra.mxu0 0.0
  %2193 = vmatprep.subr.mxu0 0.0
  %2194 = vmatpush1.msra.mxu0 0.0
  %2195 = vmatprep.subr.mxu0 0.0
  %2196 = vmatpush1.msra.mxu0 0.0
  %2197 = vmatprep.subr.mxu0 0.0
  %2198 = vmatpush1.msra.mxu0 0.0
  %2199 = vmatprep.subr.mxu0 0.0
  %2200 = vmatpush1.msra.mxu0 0.0
  %2201 = vmatprep.subr.mxu0 0.0
  %2202 = vmatpush1.msra.mxu0 0.0
  %2203 = vmatprep.subr.mxu0 0.0
  %2204 = vmatpush1.msra.mxu0 0.0
  %2205 = vmatprep.subr.mxu0 0.0
  %2206 = vmatpush1.msra.mxu0 0.0
  %2207 = vmatprep.subr.mxu0 0.0
  %2208 = vmatpush1.msra.mxu0 0.0
  %2209 = vmatprep.subr.mxu0 0.0
  %2210 = vmatpush1.msra.mxu0 0.0
  %2211 = vmatprep.subr.mxu0 0.0
  %2212 = vmatpush1.msra.mxu0 0.0
  %2213 = vmatprep.subr.mxu0 0.0
  %2214 = vmatpush1.msra.mxu0 0.0
  %2215 = vmatprep.subr.mxu0 0.0
  %2216 = vmatpush1.msra.mxu0 0.0
  %2217 = vmatprep.subr.mxu0 0.0
  %2218 = vmatpush1.msra.mxu0 0.0
  %2219 = vmatprep.subr.mxu0 0.0
  %2220 = vmatpush1.msra.mxu0 0.0
  %2221 = vmatprep.mubr.f32.mxu0 0.0
  %v2222 = vand.u32 %v1285, 4294901760
  %2223 = vmatmul.mubr.f32.gmra.mrb[0].mxu0 %v2222
  %v2224 = vpop.f32.mrb[0].mxu0
  %v2225 = vadd.f32 %v2151, %v2224
  %v2226 = vpop.f32.mrb[0].mxu0
  %v2227 = vadd.f32 %v2153, %v2226
  %2228 = vdwg.mxu0
  %v2229 = vadd.f32 %v1760, %v1762
  %v2230 = vadd.f32 %v2229, %v2225
  %v2231 = vadd.f32 %v2230, %v2227
  %2232 = vadd.xlane.f32.xlu0 %v2231
  %v2233 = vpop.xlane.xlu0 %2232
  %v2234 = vrcp.pop 512.0
  %v2235 = vmul.f32 %v2233, %v2234
  %v2236 = vsub.f32 %v1760, %v2235
  %v2237 = vsub.f32 %v1762, %v2235
  %v2238 = vsub.f32 %v2225, %v2235
  %v2239 = vsub.f32 %v2227, %v2235
  %v2240 = vmul.f32 %v2236, %v2236
  %v2241 = vmul.f32 %v2237, %v2237
  %v2242 = vmul.f32 %v2238, %v2238
  %v2243 = vmul.f32 %v2239, %v2239
  %v2244 = vadd.f32 %v2240, %v2241
  %v2245 = vadd.f32 %v2244, %v2242
  %v2246 = vadd.f32 %v2245, %v2243
  %2247 = vadd.xlane.f32.xlu0 %v2246
  %v2248 = vpop.xlane.xlu0 %2247
  %v2249 = vmul.f32 %v2248, %v2234
  %v2250 = vadd.f32 %v2249, 1e-05
  %v2251 = vrsqrt.pop %v2250
  %v2252 = vmul.f32 %v2236, %v2251
  %v2253 = vmul.f32 %v2237, %v2251
  %v2254 = vmul.f32 %v2238, %v2251
  %v2255 = vmul.f32 %v2239, %v2251
  %2256 = vst [vmem:[%s3] sm:$0xff] %v2252
  %2257 = vst [vmem:[%s3 + $0x8] sm:$0xff] %v2253
  %s2258 = scalar_lea.vmem %s3, 16
  %2259 = vst [vmem:[%s2258] sm:$0xff] %v2254
  %2260 = vst [vmem:[%s2258 + $0x8] sm:$0xff] %v2255
  // Predicated region
  $region14: #{dilconv_forward.1} parent=0 // pred_check
    _
  $region15: #{dilconv_forward.1} parent=0 // pred_check_branch
    %2262 = sbr.rel (0) target = $region17
  $region16: #{dilconv_forward.1} parent=0 // pred_region
    _
  $region17: #{dilconv_forward.1} parent=0 // pred_fallthru
    _
  // Predicated region
  $region18: #{dilconv_forward.1} parent=0 // pred_check
    _
  $region19: #{dilconv_forward.1} parent=0 // pred_check_branch
    %2264 = sbr.rel (0) target = $region21
  $region20: #{dilconv_forward.1} parent=0 // pred_region
    _
  $region21: #{dilconv_forward.1} parent=0 // pred_fallthru
    _

</llo_original>
